<compile_context>
chip_gen: v7x
topology: tpu7x:2x2x1
jax: 0.10.0
libtpu: 0.0.40
codegen_flags: <defaults>
</compile_context>

<pallas_src>
import math
from functools import partial

import jax
import jax.numpy as jnp
from jax.experimental import pallas as pl
from jax.experimental.pallas import tpu as pltpu

# ----------------------------- config (SE-ResNeXt-32x4d style) -----------------------------
LAYERS = [1, 1, 1, 1]      # small depth for the demo; block semantics are exact
GROUPS = 32
REDUCTION = 16
INPLANES = 64
BASE_WIDTH = 4
EXPANSION = 4
BN_EPS = 1e-5
STEM_PAD = 128             # stem output channels padded 64 -> 128 (lane-dense), carried forward


def _derive_vmem_limit():
    cap = 128 * 1024 * 1024
    try:
        info = pltpu.get_tpu_info()
        cap = int(getattr(info, "vmem_capacity_bytes", cap))
    except Exception:
        pass
    # ~3/4 of physical VMEM, capped: ~48 MiB on v7x (64 MiB), ~96 MiB on v5e/v6e (128 MiB).
    return min((cap * 3) // 4, 100 * 1024 * 1024)


_VMEM_LIMIT = _derive_vmem_limit()


def _pick_div(n, candidates):
    for c in candidates:
        if c <= n and n % c == 0:
            return c
    return n


def _pick_pool_tb(batch, hw, max_rows=2048):
    """Batch tile for the conv3+pool matmul: TM = tb*hw rows, tb | batch, sublane-aligned."""
    best = batch
    for tb in range(1, batch + 1):
        if batch % tb:
            continue
        tm = tb * hw
        if tm <= max_rows and (tm % 8 == 0 or tb == batch):
            best = tb
    return best


def _pick_conv2_tb(n, nphase, hq, wq, gbc, hwo, gbn, budget=8 * 1024 * 1024):
    """Images per grouped-conv grid step, bounded by a conservative VMEM estimate."""
    per_img = (nphase * hq * wq * gbc * 2 * 2       # phase input blocks (bf16, double buffered)
               + hwo * gbn * (2 * 2 + 8))           # output block (bf16, dbl-buf) + f32 accum
    tb = 1
    for cand in range(1, n + 1):
        if n % cand == 0 and cand * per_img <= budget:
            tb = cand
    return tb


# ----------------------------- generic matmul + BN (+ReLU) (+fused SE pool) -----------------------------
def _matmul_bn_act_kernel(x_ref, w_ref, s_ref, b_ref, *rest, act, pool_hw, pool_tb):
    if pool_hw is not None:
        o_ref, pool_ref, acc_ref = rest
    else:
        o_ref, acc_ref = rest

    @pl.when(pl.program_id(2) == 0)
    def _():
        acc_ref[...] = jnp.zeros_like(acc_ref)

    acc_ref[...] += jnp.dot(x_ref[...], w_ref[...], preferred_element_type=jnp.float32)

    @pl.when(pl.program_id(2) == pl.num_programs(2) - 1)
    def _():
        r = acc_ref[...] * s_ref[...] + b_ref[...]
        if pool_hw is not None:
            # fused SE squeeze: per-image spatial mean of the (pre-activation) output tile
            pool_ref[...] = jnp.mean(r.reshape(pool_tb, pool_hw, r.shape[-1]),
                                     axis=1, keepdims=True)
        if act == "relu":
            r = jnp.maximum(r, 0.0)
        o_ref[...] = r.astype(o_ref.dtype)


def matmul_bn_act(x, w, scale, bias, act, pool_hw=None, batch=None, out_dtype=jnp.bfloat16):
    """act(x @ w * scale + bias).

    x:(M,K) bf16, w:(K,Np) bf16 with Np % 128 == 0, scale/bias:(1,Np) f32 (all prepared at init).
    If pool_hw is set, M must equal batch*pool_hw (image-major rows) and a second (batch,1,Np)
    f32 output holding the per-image spatial mean of the pre-activation result is also returned.
    """
    M, K = x.shape
    Kw, Np = w.shape
    assert Kw == K and Np % 128 == 0, (K, Kw, Np)
    x = x.astype(jnp.bfloat16)

    if pool_hw is not None:
        assert batch is not None and M == batch * pool_hw
        pool_tb = _pick_pool_tb(batch, pool_hw)
        TM = pool_tb * pool_hw
    else:
        pool_tb = None
        TM = _pick_div(M, (512, 256, 128, 64, 32, 16, 8))
    TN = _pick_div(Np, (256, 128))
    TK = _pick_div(K, (512, 256, 128))
    grid = (M // TM, Np // TN, K // TK)

    in_specs = [pl.BlockSpec((TM, TK), lambda i, j, k: (i, k)),
                pl.BlockSpec((TK, TN), lambda i, j, k: (k, j)),
                pl.BlockSpec((1, TN), lambda i, j, k: (0, j)),
                pl.BlockSpec((1, TN), lambda i, j, k: (0, j))]
    if pool_hw is not None:
        out_shape = (jax.ShapeDtypeStruct((M, Np), out_dtype),
                     jax.ShapeDtypeStruct((batch, 1, Np), jnp.float32))
        out_specs = [pl.BlockSpec((TM, TN), lambda i, j, k: (i, j)),
                     pl.BlockSpec((pool_tb, 1, TN), lambda i, j, k: (i, 0, j))]
    else:
        out_shape = jax.ShapeDtypeStruct((M, Np), out_dtype)
        out_specs = pl.BlockSpec((TM, TN), lambda i, j, k: (i, j))

    # TODO(synk): pl.Buffered(3) on the weight stream would further hide DMA when K//TK is small.
    return pl.pallas_call(
        partial(_matmul_bn_act_kernel, act=act, pool_hw=pool_hw, pool_tb=pool_tb),
        out_shape=out_shape,
        grid_spec=pltpu.PrefetchScalarGridSpec(
            num_scalar_prefetch=0,
            grid=grid,
            in_specs=in_specs,
            out_specs=out_specs,
            scratch_shapes=[pltpu.VMEM((TM, TN), jnp.float32)],
        ),
        compiler_params=pltpu.CompilerParams(
            dimension_semantics=("parallel", "parallel", "arbitrary"),
            vmem_limit_bytes=_VMEM_LIMIT,
        ),
    )(x, w, scale, bias)


# ----------------------------- fused grouped 3x3 conv + BN + ReLU -----------------------------
def _grouped_conv3x3_kernel(*refs, nphase, tap_map, GB, Cg, Cog, Ho, Wo, TB):
    """im2col-free grouped 3x3 conv on one super-group, block-diagonal weight built on-chip."""
    x_refs = refs[:nphase]
    w_ref, s_ref, b_ref, o_ref = refs[nphase:nphase + 4]
    GBC = GB * Cg
    GBN = GB * Cog
    M = TB * Ho * Wo

    # Static block-diagonal mask: row r belongs to local group r // Cg, column c to c // Cog.
    row_g = jax.lax.broadcasted_iota(jnp.int32, (GBC, GBN), 0) // Cg
    col_g = jax.lax.broadcasted_iota(jnp.int32, (GBC, GBN), 1) // Cog
    diag = row_g == col_g

    acc = jnp.zeros((M, GBN), jnp.float32)
    for t, (pi, oy, ox) in enumerate(tap_map):
        win = x_refs[pi][:, oy:oy + Ho, ox:ox + Wo, :]            # (TB, Ho, Wo, GBC) bf16
        lhs = win.reshape(M, GBC)
        wt = w_ref[0, t, :, :]                                    # (Cg, GBN) dense packed weight
        wrep = jnp.tile(wt, (GB, 1))                              # (GBC, GBN)
        bd = jnp.where(diag, wrep, jnp.zeros_like(wrep))          # on-chip block-diagonal weight
        acc = acc + jnp.dot(lhs, bd, preferred_element_type=jnp.float32)

    y = jnp.maximum(acc * s_ref[...] + b_ref[...], 0.0)
    o_ref[...] = y.reshape(TB, Ho * Wo, GBN).astype(o_ref.dtype)


def conv3x3_grouped_bn_relu(x, p, stride):
    """Grouped 3x3 conv (+ folded BN + ReLU).  x:(N,H,W,C) bf16 -> (N, Ho*Wo, C) bf16."""
    N, H, W, C = x.shape
    GB, SG, Cg, Cog = p["GB"], p["SG"], p["Cg"], p["Cog"]
    GBC, GBN = GB * Cg, GB * Cog
    Ho = (H - 1) // stride + 1
    Wo = (W - 1) // stride + 1
    HWo = Ho * Wo

    xp = jnp.pad(x, ((0, 0), (1, 1), (1, 1), (0, 0)))             # single 1x padded copy
    if stride == 1:
        phases = [xp]
        Hq, Wq = H + 2, W + 2
        tap_map = tuple((0, dy, dx) for dy in range(3) for dx in range(3))
    else:
        # 2x2 phase split of the padded input: each tap becomes a unit-stride window read.
        Hq, Wq = Ho + 1, Wo + 1
        phases = []
        for pa in range(2):
            for pb in range(2):
                ph = xp[:, pa::2, pb::2, :][:, :Hq, :Wq, :]
                if ph.shape[1] != Hq or ph.shape[2] != Wq:
                    ph = jnp.pad(ph, ((0, 0), (0, Hq - ph.shape[1]),
                                      (0, Wq - ph.shape[2]), (0, 0)))
                phases.append(ph)
        tap_map = tuple(((dy % 2) * 2 + (dx % 2), dy // 2, dx // 2)
                        for dy in range(3) for dx in range(3))

    nphase = len(phases)
    TB = _pick_conv2_tb(N, nphase, Hq, Wq, GBC, HWo, GBN)

    in_specs = ([pl.BlockSpec((TB, Hq, Wq, GBC), lambda nb, s: (nb, 0, 0, s))
                 for _ in range(nphase)]
                + [pl.BlockSpec((1, 9, Cg, GBN), lambda nb, s: (s, 0, 0, 0)),
                   pl.BlockSpec((1, GBN), lambda nb, s: (0, s)),
                   pl.BlockSpec((1, GBN), lambda nb, s: (0, s))])

    kernel = partial(_grouped_conv3x3_kernel, nphase=nphase, tap_map=tap_map,
                     GB=GB, Cg=Cg, Cog=Cog, Ho=Ho, Wo=Wo, TB=TB)
    return pl.pallas_call(
        kernel,
        out_shape=jax.ShapeDtypeStruct((N, HWo, C), jnp.bfloat16),
        grid_spec=pltpu.PrefetchScalarGridSpec(
            num_scalar_prefetch=0,
            grid=(N // TB, SG),
            in_specs=in_specs,
            out_specs=pl.BlockSpec((TB, HWo, GBN), lambda nb, s: (nb, 0, s)),
        ),
        compiler_params=pltpu.CompilerParams(
            dimension_semantics=("parallel", "parallel"),
            vmem_limit_bytes=_VMEM_LIMIT,
        ),
    )(*phases, p["w_pack"], p["bn2_s"], p["bn2_b"])


# ----------------------------- SE excitation (tiny FC chain on pooled vector) -----------------------------
def _se_fc_kernel(p_ref, w1_ref, b1_ref, w2_ref, b2_ref, o_ref):
    pooled = p_ref[...][:, 0, :].astype(jnp.bfloat16)             # (Nb, C)
    h = jnp.dot(pooled, w1_ref[...], preferred_element_type=jnp.float32) + b1_ref[...]
    h = jnp.maximum(h, 0.0)
    s = jnp.dot(h.astype(jnp.bfloat16), w2_ref[...],
                preferred_element_type=jnp.float32) + b2_ref[...]
    o_ref[...] = jax.nn.sigmoid(s)


def se_fc(pooled, w1, b1, w2, b2):
    """pooled:(Nb,1,C) f32 -> sigmoid(fc2(relu(fc1(pooled)))) : (Nb, C) f32."""
    Nb, _, C = pooled.shape
    Cr = w1.shape[1]
    return pl.pallas_call(
        _se_fc_kernel,
        out_shape=jax.ShapeDtypeStruct((Nb, C), jnp.float32),
        grid_spec=pltpu.PrefetchScalarGridSpec(
            num_scalar_prefetch=0,
            grid=(1,),
            in_specs=[pl.BlockSpec((Nb, 1, C), lambda i: (0, 0, 0)),
                      pl.BlockSpec((C, Cr), lambda i: (0, 0)),
                      pl.BlockSpec((1, Cr), lambda i: (0, 0)),
                      pl.BlockSpec((Cr, C), lambda i: (0, 0)),
                      pl.BlockSpec((1, C), lambda i: (0, 0))],
            out_specs=pl.BlockSpec((Nb, C), lambda i: (0, 0)),
        ),
        compiler_params=pltpu.CompilerParams(
            dimension_semantics=("arbitrary",),
            vmem_limit_bytes=_VMEM_LIMIT,
        ),
    )(pooled, w1, b1, w2, b2)


# ----------------------------- SE scale + residual + ReLU -----------------------------
def _se_scale_res_kernel(x_ref, r_ref, s_ref, o_ref):
    x = x_ref[...].astype(jnp.float32)
    r = r_ref[...].astype(jnp.float32)
    o_ref[...] = jnp.maximum(x * s_ref[...] + r, 0.0).astype(o_ref.dtype)


def se_scale_residual_relu(x3, res3, scale):
    """relu(x * scale[n,c] + res); x3,res3:(Nb,HW,C) bf16, scale:(Nb,C) f32 -> (Nb,HW,C) bf16."""
    Nb, HW, C = x3.shape
    THW = _pick_div(HW, (512, 256, 128, 64, 32, 16, 8))
    s3 = scale.reshape(Nb, 1, C)
    return pl.pallas_call(
        _se_scale_res_kernel,
        out_shape=jax.ShapeDtypeStruct((Nb, HW, C), jnp.bfloat16),
        grid_spec=pltpu.PrefetchScalarGridSpec(
            num_scalar_prefetch=0,
            grid=(Nb, HW // THW),
            in_specs=[
                pl.BlockSpec((1, THW, C), lambda n, h: (n, h, 0)),
                pl.BlockSpec((1, THW, C), lambda n, h: (n, h, 0)),
                pl.BlockSpec((1, 1, C), lambda n, h: (n, 0, 0)),
            ],
            out_specs=pl.BlockSpec((1, THW, C), lambda n, h: (n, h, 0)),
        ),
        compiler_params=pltpu.CompilerParams(
            dimension_semantics=("parallel", "parallel"),
            vmem_limit_bytes=_VMEM_LIMIT,
        ),
    )(x3, res3, s3)


# ----------------------------- XLA glue (stem im2col, maxpool) -----------------------------
def _im2col(x, kh, kw, stride, pad):
    """x:(N,H,W,C) -> patches (N,Ho,Wo,kh*kw,C) (tap-major)."""
    N, H, W, C = x.shape
    xp = jnp.pad(x, ((0, 0), (pad, pad), (pad, pad), (0, 0)))
    Ho = (H + 2 * pad - kh) // stride + 1
    Wo = (W + 2 * pad - kw) // stride + 1
    cols = []
    for i in range(kh):
        for j in range(kw):
            cols.append(xp[:, i:i + Ho * stride:stride, j:j + Wo * stride:stride, :])
    patches = jnp.stack(cols, axis=3)
    return patches, Ho, Wo


def stem_conv(x, p0):
    """7x7/s2 stem conv + BN + ReLU; output stays padded to 128 channels (lane-dense)."""
    # TODO(synk): the stem im2col patch tensor is still materialized in HBM (tiny vs the rest).
    N = x.shape[0]
    patches, Ho, Wo = _im2col(x, 7, 7, 2, 3)
    K = p0["k_im2col"]
    xm = patches.reshape(N * Ho * Wo, K)
    xm = jnp.pad(xm, ((0, 0), (0, p0["w"].shape[0] - K)))
    out = matmul_bn_act(xm, p0["w"], p0["bn_s"], p0["bn_b"], act="relu")
    return out.reshape(N, Ho, Wo, p0["w"].shape[1])


def maxpool_3x3_s2_ceil(x):
    """MaxPool2d(3, stride=2, ceil_mode=True) on NHWC."""
    # TODO(synk): pooling kept as lax.reduce_window glue (not a Pallas kernel).
    N, H, W, C = x.shape
    Ho = -(-(H - 3) // 2) + 1
    Wo = -(-(W - 3) // 2) + 1
    pad_h = max((Ho - 1) * 2 + 3 - H, 0)
    pad_w = max((Wo - 1) * 2 + 3 - W, 0)
    return jax.lax.reduce_window(
        x, jnp.array(-jnp.inf, x.dtype), jax.lax.max,
        (1, 3, 3, 1), (1, 2, 2, 1),
        ((0, 0), (0, pad_h), (0, pad_w), (0, 0)))


# ----------------------------- parameters (raw PyTorch-layout -> kernel-ready, done once) -----------------------------
def _fold_bn(c):
    gamma = jnp.ones((c,), jnp.float32)
    beta = jnp.zeros((c,), jnp.float32)
    mean = jnp.zeros((c,), jnp.float32)
    var = jnp.ones((c,), jnp.float32)
    s = gamma / jnp.sqrt(var + BN_EPS)
    b = beta - mean * s
    return s, b


def init_raw_params(key):
    keys = iter(jax.random.split(key, 512))

    def conv_w(cout, cin, kh, kw):
        fan_in = cin * kh * kw
        return (jax.random.normal(next(keys), (cout, cin, kh, kw), jnp.float32)
                / math.sqrt(fan_in))

    raw = {}
    s0, b0 = _fold_bn(INPLANES)
    raw["layer0"] = {"conv1_w": conv_w(INPLANES, 3, 7, 7), "bn1_s": s0, "bn1_b": b0}

    def make_block(inplanes, planes, stride, has_down):
        width = (planes * BASE_WIDTH // 64) * GROUPS
        cout = planes * EXPANSION
        cr = cout // REDUCTION
        p = {"stride": stride, "inplanes": inplanes}
        p["conv1_w"] = conv_w(width, inplanes, 1, 1)
        p["bn1_s"], p["bn1_b"] = _fold_bn(width)
        p["conv2_w"] = conv_w(width, width // GROUPS, 3, 3)
        p["bn2_s"], p["bn2_b"] = _fold_bn(width)
        p["conv3_w"] = conv_w(cout, width, 1, 1)
        p["bn3_s"], p["bn3_b"] = _fold_bn(cout)
        p["se_fc1_w"] = conv_w(cr, cout, 1, 1)
        p["se_fc1_b"] = jnp.zeros((cr,), jnp.float32)
        p["se_fc2_w"] = conv_w(cout, cr, 1, 1)
        p["se_fc2_b"] = jnp.zeros((cout,), jnp.float32)
        if has_down:
            p["down_w"] = conv_w(cout, inplanes, 1, 1)   # downsample k=1, p=0 (SE-ResNeXt)
            p["down_bn_s"], p["down_bn_b"] = _fold_bn(cout)
        return p

    inplanes = INPLANES
    for li, (planes, nblocks, stride) in enumerate(zip([64, 128, 256, 512], LAYERS, [1, 2, 2, 2])):
        blocks = []
        has_down = (stride != 1) or (inplanes != planes * EXPANSION)
        blocks.append(make_block(inplanes, planes, stride, has_down))
        inplanes = planes * EXPANSION
        for _ in range(1, nblocks):
            blocks.append(make_block(inplanes, planes, 1, False))
        raw[f"layer{li + 1}"] = blocks
    return raw


def _prep_1x1(w, k_pad=None):
    """PyTorch (Cout, Cin, 1, 1) -> (Kp, Cout) bf16 with optional zero row padding."""
    cout, cin = w.shape[0], w.shape[1]
    wm = jnp.transpose(w.reshape(cout, cin), (1, 0))
    if k_pad is not None and k_pad > cin:
        wm = jnp.pad(wm, ((0, k_pad - cin), (0, 0)))
    return wm.astype(jnp.bfloat16)


def _prep_bn(s, b, n_pad=None):
    if n_pad is not None and n_pad > s.shape[0]:
        s = jnp.pad(s, (0, n_pad - s.shape[0]))
        b = jnp.pad(b, (0, n_pad - b.shape[0]))
    return s.reshape(1, -1).astype(jnp.float32), b.reshape(1, -1).astype(jnp.float32)


def _prep_grouped(w, groups):
    """PyTorch grouped 3x3 weight (Cout, Cg, 3, 3) -> dense super-group packing.

    Returns w_pack (SG, 9, Cg, GB*Cog) bf16 with
      w_pack[s, dy*3+dx, ci, g*Cog+co] = w[(s*GB+g)*Cog+co, ci, dy, dx].
    """
    cout, cg = w.shape[0], w.shape[1]
    cog = cout // groups
    gb = min(groups, max(1, 256 // max(cog, 1)))   # TODO(synk): prefer 128-lane tiles on v5e.
    while groups % gb:
        gb -= 1
    sg = groups // gb
    wr = w.reshape(sg, gb, cog, cg, 3, 3)                            # [s, g, co, ci, dy, dx]
    wp = jnp.transpose(wr, (0, 4, 5, 3, 1, 2)).reshape(sg, 9, cg, gb * cog)
    return wp.astype(jnp.bfloat16), gb, sg, cg, cog


def prepare_params(raw):
    """One-time conversion of PyTorch-layout weights into the kernels' layouts (hoisted)."""
    prep = {}
    # stem: 7x7 im2col weight, K 147 -> 256, Cout 64 -> 128, folded BN padded with zeros.
    w7 = raw["layer0"]["conv1_w"]
    k7 = 7 * 7 * 3
    wm = jnp.transpose(w7, (2, 3, 1, 0)).reshape(k7, INPLANES)
    wm = jnp.pad(wm, ((0, 256 - k7), (0, STEM_PAD - INPLANES)))
    s0, b0 = _prep_bn(raw["layer0"]["bn1_s"], raw["layer0"]["bn1_b"], n_pad=STEM_PAD)
    prep["layer0"] = {"w": wm.astype(jnp.bfloat16), "bn_s": s0, "bn_b": b0, "k_im2col": k7}

    for li in range(1, 5):
        blocks = []
        for bi, rb in enumerate(raw[f"layer{li}"]):
            k_pad = STEM_PAD if (li == 1 and bi == 0) else None   # stem activation carries 128 ch
            p = {"stride": rb["stride"]}
            p["w1"] = _prep_1x1(rb["conv1_w"], k_pad=k_pad)
            p["bn1_s"], p["bn1_b"] = _prep_bn(rb["bn1_s"], rb["bn1_b"])
            p["w_pack"], p["GB"], p["SG"], p["Cg"], p["Cog"] = _prep_grouped(rb["conv2_w"], GROUPS)
            p["bn2_s"], p["bn2_b"] = _prep_bn(rb["bn2_s"], rb["bn2_b"])
            p["w3"] = _prep_1x1(rb["conv3_w"])
            p["bn3_s"], p["bn3_b"] = _prep_bn(rb["bn3_s"], rb["bn3_b"])
            cr, cout = rb["se_fc1_w"].shape[0], rb["se_fc1_w"].shape[1]
            p["se_w1"] = _prep_1x1(rb["se_fc1_w"])                 # (cout, cr) bf16
            p["se_b1"] = rb["se_fc1_b"].reshape(1, cr).astype(jnp.float32)
            p["se_w2"] = _prep_1x1(rb["se_fc2_w"])                 # (cr, cout) bf16
            p["se_b2"] = rb["se_fc2_b"].reshape(1, cout).astype(jnp.float32)
            if "down_w" in rb:
                p["wd"] = _prep_1x1(rb["down_w"], k_pad=k_pad)
                p["bnd_s"], p["bnd_b"] = _prep_bn(rb["down_bn_s"], rb["down_bn_b"])
            blocks.append(p)
        prep[f"layer{li}"] = blocks
    return prep


# ----------------------------- forward -----------------------------
def bottleneck_forward(p, x):
    N, H, W, Cin = x.shape
    stride = p["stride"]
    width = p["bn1_s"].shape[1]
    cout = p["bn3_s"].shape[1]
    Ho = (H - 1) // stride + 1
    Wo = (W - 1) // stride + 1
    HWo = Ho * Wo

    # conv1 (1x1) + bn1 + relu
    h1 = matmul_bn_act(x.reshape(N * H * W, Cin), p["w1"], p["bn1_s"], p["bn1_b"], act="relu")
    h1 = h1.reshape(N, H, W, width)

    # conv2 (grouped 3x3, stride) + bn2 + relu — fused im2col + on-chip block-diagonal weight
    h2 = conv3x3_grouped_bn_relu(h1, p, stride)                    # (N, HWo, width)

    # conv3 (1x1) + bn3, with the SE global-average-pool fused as a second output
    h3, pooled = matmul_bn_act(h2.reshape(N * HWo, width), p["w3"], p["bn3_s"], p["bn3_b"],
                               act="none", pool_hw=HWo, batch=N)

    # residual branch
    if "wd" in p:
        xr = x if stride == 1 else x[:, ::stride, ::stride, :]
        # TODO(synk): the strided subsample could be folded into the matmul BlockSpec.
        res = matmul_bn_act(xr.reshape(N * HWo, Cin), p["wd"], p["bnd_s"], p["bnd_b"], act="none")
    else:
        res = x.reshape(N * HWo, cout)

    # SE excitation (tiny FC chain) + channel scale + residual add + relu
    scale = se_fc(pooled, p["se_w1"], p["se_b1"], p["se_w2"], p["se_b2"])
    y = se_scale_residual_relu(h3.reshape(N, HWo, cout), res.reshape(N, HWo, cout), scale)
    return y.reshape(N, Ho, Wo, cout)


def senet_forward(params, x_nchw):
    # PyTorch NCHW in/out; kernels run NHWC (channels on the 128-lane axis), bf16 activations.
    x = jnp.transpose(x_nchw, (0, 2, 3, 1)).astype(jnp.bfloat16)
    x = stem_conv(x, params["layer0"])
    x = maxpool_3x3_s2_ceil(x)
    for name in ("layer1", "layer2", "layer3", "layer4"):
        for blk in params[name]:
            x = bottleneck_forward(blk, x)
    return jnp.transpose(x, (0, 3, 1, 2)).astype(jnp.float32)      # back to NCHW, f32


# ----------------------------- main -----------------------------
if __name__ == "__main__":
    key = jax.random.PRNGKey(0)
    pkey, xkey = jax.random.split(key)
    raw = init_raw_params(pkey)
    params = prepare_params(raw)          # one-time weight preprocessing, outside the forward
    x = jax.random.normal(xkey, (2, 3, 32, 32), jnp.float32)
    out = senet_forward(params, x)
    out = jax.block_until_ready(out)
    assert out.shape == (2, 512 * EXPANSION, 1, 1), out.shape
    assert bool(jnp.all(jnp.isfinite(out)))
    print("KERNEL_OK")
</pallas_src>

<mosaic_0001>
module attributes {stable_mosaic.version = 11 : i64} {
  func.func @_matmul_bn_act_kernel(%arg0: i32, %arg1: i32, %arg2: i32, %arg3: memref<512x256xbf16, #tpu.memory_space<vmem>>, %arg4: memref<256x128xbf16, #tpu.memory_space<vmem>>, %arg5: memref<1x128xf32, #tpu.memory_space<vmem>>, %arg6: memref<1x128xf32, #tpu.memory_space<vmem>>, %arg7: memref<512x128xbf16, #tpu.memory_space<vmem>>, %arg8: memref<512x128xf32, #tpu.memory_space<vmem>>) attributes {dimension_semantics = [#tpu.dimension_semantics<parallel>, #tpu.dimension_semantics<parallel>, #tpu.dimension_semantics<arbitrary>], iteration_bounds = array<i64: 1, 1, 1>, scalar_prefetch = 0 : i64, scratch_operands = 1 : i64, tpu.core_type = #tpu.core_type<tc>, window_params = [{transform_indices = @transform_0, window_bounds = array<i64: 512, 256>}, {transform_indices = @transform_1, window_bounds = array<i64: 256, 128>}, {transform_indices = @transform_2, window_bounds = array<i64: 1, 128>}, {transform_indices = @transform_3, window_bounds = array<i64: 1, 128>}, {transform_indices = @transform_4, window_bounds = array<i64: 512, 128>}]} {
    %c0_i32 = arith.constant 0 : i32
    %0 = arith.cmpi eq, %arg2, %c0_i32 : i32
    %1 = arith.extui %0 : i1 to i32
    %c0_i32_0 = arith.constant 0 : i32
    %2 = arith.cmpi ne, %1, %c0_i32_0 : i32
    scf.if %2 {
      %cst_10 = arith.constant 0.000000e+00 : f32
      %12 = vector.broadcast %cst_10 : f32 to vector<512x128xf32>
      %c0_11 = arith.constant 0 : index
      %c0_12 = arith.constant 0 : index
      %13 = vector.load %arg8[%c0_11, %c0_12] : memref<512x128xf32, #tpu.memory_space<vmem>>, vector<512x128xf32>
      tpu.vector_store %arg8[%c0_11, %c0_12], %12 {strides = array<i32>} : memref<512x128xf32, #tpu.memory_space<vmem>>, vector<512x128xf32>,
    } else {
    }
    %c0 = arith.constant 0 : index
    %c0_1 = arith.constant 0 : index
    %3 = vector.load %arg8[%c0, %c0_1] : memref<512x128xf32, #tpu.memory_space<vmem>>, vector<512x128xf32>
    %c0_2 = arith.constant 0 : index
    %c0_3 = arith.constant 0 : index
    %4 = vector.load %arg3[%c0_2, %c0_3] : memref<512x256xbf16, #tpu.memory_space<vmem>>, vector<512x256xbf16>
    %c0_4 = arith.constant 0 : index
    %c0_5 = arith.constant 0 : index
    %5 = vector.load %arg4[%c0_4, %c0_5] : memref<256x128xbf16, #tpu.memory_space<vmem>>, vector<256x128xbf16>
    %cst = arith.constant dense<0.000000e+00> : vector<512x128xf32>
    %6 = tpu.matmul %4, %5, %cst {dimension_numbers = #tpu.dot_dimension_numbers<[1], [0], [0], [1], [0, 0, 1, 1], [], []>} : vector<512x256xbf16>, vector<256x128xbf16>, vector<512x128xf32> -> vector<512x128xf32>
    %7 = arith.addf %3, %6 : vector<512x128xf32>
    %c0_6 = arith.constant 0 : index
    %c0_7 = arith.constant 0 : index
    %8 = vector.load %arg8[%c0_6, %c0_7] : memref<512x128xf32, #tpu.memory_space<vmem>>, vector<512x128xf32>
    tpu.vector_store %arg8[%c0_6, %c0_7], %7 {strides = array<i32>} : memref<512x128xf32, #tpu.memory_space<vmem>>, vector<512x128xf32>,
    %c0_i32_8 = arith.constant 0 : i32
    %9 = arith.cmpi eq, %arg2, %c0_i32_8 : i32
    %10 = arith.extui %9 : i1 to i32
    %c0_i32_9 = arith.constant 0 : i32
    %11 = arith.cmpi ne, %10, %c0_i32_9 : i32
    scf.if %11 {
      %c0_10 = arith.constant 0 : index
      %c0_11 = arith.constant 0 : index
      %12 = vector.load %arg8[%c0_10, %c0_11] : memref<512x128xf32, #tpu.memory_space<vmem>>, vector<512x128xf32>
      %c0_12 = arith.constant 0 : index
      %c0_13 = arith.constant 0 : index
      %13 = vector.load %arg5[%c0_12, %c0_13] : memref<1x128xf32, #tpu.memory_space<vmem>>, vector<1x128xf32>
      %14 = vector.broadcast %13 : vector<1x128xf32> to vector<512x128xf32>
      %15 = arith.mulf %12, %14 : vector<512x128xf32>
      %c0_14 = arith.constant 0 : index
      %c0_15 = arith.constant 0 : index
      %16 = vector.load %arg6[%c0_14, %c0_15] : memref<1x128xf32, #tpu.memory_space<vmem>>, vector<1x128xf32>
      %17 = vector.broadcast %16 : vector<1x128xf32> to vector<512x128xf32>
      %18 = arith.addf %15, %17 : vector<512x128xf32>
      %cst_16 = arith.constant 0.000000e+00 : f32
      %19 = vector.broadcast %cst_16 : f32 to vector<512x128xf32>
      %20 = arith.maximumf %18, %19 : vector<512x128xf32>
      %21 = arith.truncf %20 : vector<512x128xf32> to vector<512x128xbf16>
      %c0_17 = arith.constant 0 : index
      %c0_18 = arith.constant 0 : index
      %22 = vector.load %arg7[%c0_17, %c0_18] : memref<512x128xbf16, #tpu.memory_space<vmem>>, vector<512x128xbf16>
      tpu.vector_store %arg7[%c0_17, %c0_18], %21 {strides = array<i32>} : memref<512x128xbf16, #tpu.memory_space<vmem>>, vector<512x128xbf16>,
    } else {
    }
    return
  }
  func.func @transform_0(%arg0: i32, %arg1: i32, %arg2: i32) -> (i32, i32) {
    %c0_i32 = arith.constant 0 : i32
    return %arg0, %arg2 : i32, i32
  }
  func.func @transform_1(%arg0: i32, %arg1: i32, %arg2: i32) -> (i32, i32) {
    %c0_i32 = arith.constant 0 : i32
    return %arg2, %arg1 : i32, i32
  }
  func.func @transform_2(%arg0: i32, %arg1: i32, %arg2: i32) -> (i32, i32) {
    %c0_i32 = arith.constant 0 : i32
    %c0_i32_0 = arith.constant 0 : i32
    return %c0_i32, %arg1 : i32, i32
  }
  func.func @transform_3(%arg0: i32, %arg1: i32, %arg2: i32) -> (i32, i32) {
    %c0_i32 = arith.constant 0 : i32
    %c0_i32_0 = arith.constant 0 : i32
    return %c0_i32, %arg1 : i32, i32
  }
  func.func @transform_4(%arg0: i32, %arg1: i32, %arg2: i32) -> (i32, i32) {
    %c0_i32 = arith.constant 0 : i32
    return %arg0, %arg1 : i32, i32
  }
}

</mosaic_0001>

<llo_original>
// kernel: tpu_custom_call.1
$region0: #{tpu_custom_call.1}
  #allocation0 [shape = 'u32[]', space=smem, size = 0x4, offset = 0x4, fixed_abs, tag = 'smem constant byte address 0x4 - core index']
  #allocation1 [shape = 'u32[144,128]{1,0:T(1,128)}', space=vmem, size = 0x12000, scoped, tag = 'internal scratch']
  #allocation2 [shape = 'f32[512,128]{1,0:T(8,128)}', space=vmem, size = 0x40000, scoped, tag = 'scratch operand']
  %s0 = inlined_call_operand.hbm [shape: bf16[512,256], index: 0, kind: input, shape index: {}]
  %s1 = inlined_call_operand.hbm [shape: bf16[256,128], index: 1, kind: input, shape index: {}]
  %s2 = inlined_call_operand.hbm [shape: f32[1,128], index: 2, kind: input, shape index: {}]
  %s3 = inlined_call_operand.hbm [shape: f32[1,128], index: 3, kind: input, shape index: {}]
  %s4 = inlined_call_operand.hbm [shape: bf16[512,128], index: 4, kind: output, shape index: {}]
  %s5 = sld [smem:[#allocation0]]
  $region50: #{tpu_custom_call.1} parent=0
    _
  %s7 = ssub.s32 1, %s5
  %s8 = scalar_select 0, %s7, %s5
  $region1: #{tpu_custom_call.1} parent=0
    #allocation3 [shape = 'u8[262144]{0}', space=vmem, size = 0x40000, scoped, tag = 'input window, operand 0, single buffered']
    #allocation4 [shape = 's32[1]{0}', space=sflag, size = 0x4, scoped, tag = 'scoped memory for tpu_custom_call.1']
    #allocation5 [shape = 's32[1]{0}', space=sflag, size = 0x4, scoped, tag = 'scoped memory for tpu_custom_call.1']
    #allocation6 [shape = 'u8[65536]{0}', space=vmem, size = 0x10000, scoped, tag = 'input window, operand 1, single buffered']
    #allocation7 [shape = 's32[1]{0}', space=sflag, size = 0x4, scoped, tag = 'scoped memory for tpu_custom_call.1']
    #allocation8 [shape = 'u8[512]{0}', space=vmem, size = 0x400, scoped, tag = 'input window, operand 2, single buffered']
    #allocation9 [shape = 'u8[512]{0}', space=vmem, size = 0x400, scoped, tag = 'input window, operand 3, single buffered']
    #allocation10 [shape = 's32[1]{0}', space=sflag, size = 0x4, scoped, tag = 'scoped memory for tpu_custom_call.1']
    #allocation11 [shape = 'u8[131072]{0}', space=vmem, size = 0x20000, scoped, tag = 'output window, operand 0, single buffered']
    %9 = vsyncpa [#allocation4], 0
    %10 = vsyncpa [#allocation7], 0
    %11 = vsyncpa [#allocation10], 0
    %12 = vsyncpa [#allocation5], 0
    // Predicated region
    $region2: #{tpu_custom_call.1} parent=1 // pred_check
      _
    $region3: #{tpu_custom_call.1} parent=1 // pred_check_branch
      %14 = sbr.rel (0) target = $region5
    $region4: #{tpu_custom_call.1} parent=1 // pred_region
      %s16 = ssub.s32 8192, 8192
      %17 = vsyncadd [#allocation4], %s16
      %s18 = sshll.u32 [#allocation3], 4
      %s19 = int_to_ptr.vmem [resolvable:$true] %s18
      %24 = dma.hbm_to_vmem [thread:$0]  %s0, 8192, %s19, [#allocation4], 128, 128, 8
    $region5: #{tpu_custom_call.1} parent=1 // pred_fallthru
      _
    // Predicated region
    $region6: #{tpu_custom_call.1} parent=1 // pred_check
      _
    $region7: #{tpu_custom_call.1} parent=1 // pred_check_branch
      %26 = sbr.rel (0) target = $region9
    $region8: #{tpu_custom_call.1} parent=1 // pred_region
      %s28 = ssub.s32 2048, 2048
      %29 = vsyncadd [#allocation7], %s28
      %s30 = sshll.u32 [#allocation6], 4
      %s31 = int_to_ptr.vmem [resolvable:$true] %s30
      %36 = dma.hbm_to_vmem [thread:$0]  %s1, 2048, %s31, [#allocation7], 64, 64, 4
    $region9: #{tpu_custom_call.1} parent=1 // pred_fallthru
      _
    // Predicated region
    $region10: #{tpu_custom_call.1} parent=1 // pred_check
      _
    $region11: #{tpu_custom_call.1} parent=1 // pred_check_branch
      %38 = sbr.rel (0) target = $region13
    $region12: #{tpu_custom_call.1} parent=1 // pred_region
      %s40 = ssub.s32 16, 16
      %41 = vsyncadd [#allocation7], %s40
      %s43 = sshll.u32 [#allocation8], 4
      %s44 = int_to_ptr.vmem [resolvable:$true] %s43
      %46 = dma.hbm_to_vmem [thread:$0]  %s2, 16, %s44, [#allocation7]
    $region13: #{tpu_custom_call.1} parent=1 // pred_fallthru
      _
    // Predicated region
    $region14: #{tpu_custom_call.1} parent=1 // pred_check
      _
    $region15: #{tpu_custom_call.1} parent=1 // pred_check_branch
      %48 = sbr.rel (0) target = $region17
    $region16: #{tpu_custom_call.1} parent=1 // pred_region
      %s50 = ssub.s32 16, 16
      %51 = vsyncadd [#allocation10], %s50
      %s53 = sshll.u32 [#allocation9], 4
      %s54 = int_to_ptr.vmem [resolvable:$true] %s53
      %56 = dma.hbm_to_vmem [thread:$0]  %s3, 16, %s54, [#allocation10]
    $region17: #{tpu_custom_call.1} parent=1 // pred_fallthru
      _
    // Predicated region
    $region18: #{tpu_custom_call.1} parent=1 // pred_check
      _
    $region19: #{tpu_custom_call.1} parent=1 // pred_check_branch
      %58 = sbr.rel (0) target = $region21
    $region20: #{tpu_custom_call.1} parent=1 // pred_region
      %59 = dma.done [#allocation4], 8192
    $region21: #{tpu_custom_call.1} parent=1 // pred_fallthru
      _
    // Predicated region
    $region22: #{tpu_custom_call.1} parent=1 // pred_check
      _
    $region23: #{tpu_custom_call.1} parent=1 // pred_check_branch
      %61 = sbr.rel (0) target = $region25
    $region24: #{tpu_custom_call.1} parent=1 // pred_region
      %62 = dma.done [#allocation7], 2048
    $region25: #{tpu_custom_call.1} parent=1 // pred_fallthru
      _
    // Predicated region
    $region26: #{tpu_custom_call.1} parent=1 // pred_check
      _
    $region27: #{tpu_custom_call.1} parent=1 // pred_check_branch
      %64 = sbr.rel (0) target = $region29
    $region28: #{tpu_custom_call.1} parent=1 // pred_region
      %65 = dma.done [#allocation7], 16
    $region29: #{tpu_custom_call.1} parent=1 // pred_fallthru
      _
    // Predicated region
    $region30: #{tpu_custom_call.1} parent=1 // pred_check
      _
    $region31: #{tpu_custom_call.1} parent=1 // pred_check_branch
      %67 = sbr.rel (0) target = $region33
    $region32: #{tpu_custom_call.1} parent=1 // pred_region
      %68 = dma.done [#allocation10], 16
    $region33: #{tpu_custom_call.1} parent=1 // pred_fallthru
      _
    %p70 = scmp.eq.s32.totalorder 0, 0
    // Predicated region
    $region34: #{tpu_custom_call.1} parent=1 // pred_check
      %p71 = pneg %p70
    $region35: #{tpu_custom_call.1} parent=1 // pred_check_branch
      %73 = sbr.rel (%p71) target = $region37
    $region36: #{tpu_custom_call.1} parent=1 // pred_region
      %74 = vst [vmem:[#allocation2] sm:$0xff] 0.0
      %75 = vst [vmem:[#allocation2 + $0x8] sm:$0xff] 0.0
      %76 = vst [vmem:[#allocation2 + $0x10] sm:$0xff] 0.0
      %77 = vst [vmem:[#allocation2 + $0x18] sm:$0xff] 0.0
      %78 = vst [vmem:[#allocation2 + $0x20] sm:$0xff] 0.0
      %79 = vst [vmem:[#allocation2 + $0x28] sm:$0xff] 0.0
      %80 = vst [vmem:[#allocation2 + $0x30] sm:$0xff] 0.0
      %81 = vst [vmem:[#allocation2 + $0x38] sm:$0xff] 0.0
      %82 = vst [vmem:[#allocation2 + $0x40] sm:$0xff] 0.0
      %83 = vst [vmem:[#allocation2 + $0x48] sm:$0xff] 0.0
      %84 = vst [vmem:[#allocation2 + $0x50] sm:$0xff] 0.0
      %85 = vst [vmem:[#allocation2 + $0x58] sm:$0xff] 0.0
      %86 = vst [vmem:[#allocation2 + $0x60] sm:$0xff] 0.0
      %87 = vst [vmem:[#allocation2 + $0x68] sm:$0xff] 0.0
      %88 = vst [vmem:[#allocation2 + $0x70] sm:$0xff] 0.0
      %89 = vst [vmem:[#allocation2 + $0x78] sm:$0xff] 0.0
      %90 = vst [vmem:[#allocation2 + $0x80] sm:$0xff] 0.0
      %91 = vst [vmem:[#allocation2 + $0x88] sm:$0xff] 0.0
      %92 = vst [vmem:[#allocation2 + $0x90] sm:$0xff] 0.0
      %93 = vst [vmem:[#allocation2 + $0x98] sm:$0xff] 0.0
      %94 = vst [vmem:[#allocation2 + $0xa0] sm:$0xff] 0.0
      %95 = vst [vmem:[#allocation2 + $0xa8] sm:$0xff] 0.0
      %96 = vst [vmem:[#allocation2 + $0xb0] sm:$0xff] 0.0
      %97 = vst [vmem:[#allocation2 + $0xb8] sm:$0xff] 0.0
      %98 = vst [vmem:[#allocation2 + $0xc0] sm:$0xff] 0.0
      %99 = vst [vmem:[#allocation2 + $0xc8] sm:$0xff] 0.0
      %100 = vst [vmem:[#allocation2 + $0xd0] sm:$0xff] 0.0
      %101 = vst [vmem:[#allocation2 + $0xd8] sm:$0xff] 0.0
      %102 = vst [vmem:[#allocation2 + $0xe0] sm:$0xff] 0.0
      %103 = vst [vmem:[#allocation2 + $0xe8] sm:$0xff] 0.0
      %104 = vst [vmem:[#allocation2 + $0xf0] sm:$0xff] 0.0
      %105 = vst [vmem:[#allocation2 + $0xf8] sm:$0xff] 0.0
      %106 = vst [vmem:[#allocation2 + $0x100] sm:$0xff] 0.0
      %107 = vst [vmem:[#allocation2 + $0x108] sm:$0xff] 0.0
      %108 = vst [vmem:[#allocation2 + $0x110] sm:$0xff] 0.0
      %109 = vst [vmem:[#allocation2 + $0x118] sm:$0xff] 0.0
      %110 = vst [vmem:[#allocation2 + $0x120] sm:$0xff] 0.0
      %111 = vst [vmem:[#allocation2 + $0x128] sm:$0xff] 0.0
      %112 = vst [vmem:[#allocation2 + $0x130] sm:$0xff] 0.0
      %113 = vst [vmem:[#allocation2 + $0x138] sm:$0xff] 0.0
      %114 = vst [vmem:[#allocation2 + $0x140] sm:$0xff] 0.0
      %115 = vst [vmem:[#allocation2 + $0x148] sm:$0xff] 0.0
      %116 = vst [vmem:[#allocation2 + $0x150] sm:$0xff] 0.0
      %117 = vst [vmem:[#allocation2 + $0x158] sm:$0xff] 0.0
      %118 = vst [vmem:[#allocation2 + $0x160] sm:$0xff] 0.0
      %119 = vst [vmem:[#allocation2 + $0x168] sm:$0xff] 0.0
      %120 = vst [vmem:[#allocation2 + $0x170] sm:$0xff] 0.0
      %121 = vst [vmem:[#allocation2 + $0x178] sm:$0xff] 0.0
      %122 = vst [vmem:[#allocation2 + $0x180] sm:$0xff] 0.0
      %123 = vst [vmem:[#allocation2 + $0x188] sm:$0xff] 0.0
      %124 = vst [vmem:[#allocation2 + $0x190] sm:$0xff] 0.0
      %125 = vst [vmem:[#allocation2 + $0x198] sm:$0xff] 0.0
      %126 = vst [vmem:[#allocation2 + $0x1a0] sm:$0xff] 0.0
      %127 = vst [vmem:[#allocation2 + $0x1a8] sm:$0xff] 0.0
      %128 = vst [vmem:[#allocation2 + $0x1b0] sm:$0xff] 0.0
      %129 = vst [vmem:[#allocation2 + $0x1b8] sm:$0xff] 0.0
      %130 = vst [vmem:[#allocation2 + $0x1c0] sm:$0xff] 0.0
      %131 = vst [vmem:[#allocation2 + $0x1c8] sm:$0xff] 0.0
      %132 = vst [vmem:[#allocation2 + $0x1d0] sm:$0xff] 0.0
      %133 = vst [vmem:[#allocation2 + $0x1d8] sm:$0xff] 0.0
      %134 = vst [vmem:[#allocation2 + $0x1e0] sm:$0xff] 0.0
      %135 = vst [vmem:[#allocation2 + $0x1e8] sm:$0xff] 0.0
      %136 = vst [vmem:[#allocation2 + $0x1f0] sm:$0xff] 0.0
      %137 = vst [vmem:[#allocation2 + $0x1f8] sm:$0xff] 0.0
    $region37: #{tpu_custom_call.1} parent=1 // pred_fallthru
      _
    %v138 = vld [vmem:[#allocation2] sm:$0xff]
    %v139 = vld [vmem:[#allocation2 + $0x8] sm:$0xff]
    %v140 = vld [vmem:[#allocation2 + $0x10] sm:$0xff]
    %v141 = vld [vmem:[#allocation2 + $0x18] sm:$0xff]
    %v142 = vld [vmem:[#allocation2 + $0x20] sm:$0xff]
    %v143 = vld [vmem:[#allocation2 + $0x28] sm:$0xff]
    %v144 = vld [vmem:[#allocation2 + $0x30] sm:$0xff]
    %v145 = vld [vmem:[#allocation2 + $0x38] sm:$0xff]
    %v146 = vld [vmem:[#allocation2 + $0x40] sm:$0xff]
    %v147 = vld [vmem:[#allocation2 + $0x48] sm:$0xff]
    %v148 = vld [vmem:[#allocation2 + $0x50] sm:$0xff]
    %v149 = vld [vmem:[#allocation2 + $0x58] sm:$0xff]
    %v150 = vld [vmem:[#allocation2 + $0x60] sm:$0xff]
    %v151 = vld [vmem:[#allocation2 + $0x68] sm:$0xff]
    %v152 = vld [vmem:[#allocation2 + $0x70] sm:$0xff]
    %v153 = vld [vmem:[#allocation2 + $0x78] sm:$0xff]
    %v154 = vld [vmem:[#allocation2 + $0x80] sm:$0xff]
    %v155 = vld [vmem:[#allocation2 + $0x88] sm:$0xff]
    %v156 = vld [vmem:[#allocation2 + $0x90] sm:$0xff]
    %v157 = vld [vmem:[#allocation2 + $0x98] sm:$0xff]
    %v158 = vld [vmem:[#allocation2 + $0xa0] sm:$0xff]
    %v159 = vld [vmem:[#allocation2 + $0xa8] sm:$0xff]
    %v160 = vld [vmem:[#allocation2 + $0xb0] sm:$0xff]
    %v161 = vld [vmem:[#allocation2 + $0xb8] sm:$0xff]
    %v162 = vld [vmem:[#allocation2 + $0xc0] sm:$0xff]
    %v163 = vld [vmem:[#allocation2 + $0xc8] sm:$0xff]
    %v164 = vld [vmem:[#allocation2 + $0xd0] sm:$0xff]
    %v165 = vld [vmem:[#allocation2 + $0xd8] sm:$0xff]
    %v166 = vld [vmem:[#allocation2 + $0xe0] sm:$0xff]
    %v167 = vld [vmem:[#allocation2 + $0xe8] sm:$0xff]
    %v168 = vld [vmem:[#allocation2 + $0xf0] sm:$0xff]
    %v169 = vld [vmem:[#allocation2 + $0xf8] sm:$0xff]
    %v170 = vld [vmem:[#allocation2 + $0x100] sm:$0xff]
    %v171 = vld [vmem:[#allocation2 + $0x108] sm:$0xff]
    %v172 = vld [vmem:[#allocation2 + $0x110] sm:$0xff]
    %v173 = vld [vmem:[#allocation2 + $0x118] sm:$0xff]
    %v174 = vld [vmem:[#allocation2 + $0x120] sm:$0xff]
    %v175 = vld [vmem:[#allocation2 + $0x128] sm:$0xff]
    %v176 = vld [vmem:[#allocation2 + $0x130] sm:$0xff]
    %v177 = vld [vmem:[#allocation2 + $0x138] sm:$0xff]
    %v178 = vld [vmem:[#allocation2 + $0x140] sm:$0xff]
    %v179 = vld [vmem:[#allocation2 + $0x148] sm:$0xff]
    %v180 = vld [vmem:[#allocation2 + $0x150] sm:$0xff]
    %v181 = vld [vmem:[#allocation2 + $0x158] sm:$0xff]
    %v182 = vld [vmem:[#allocation2 + $0x160] sm:$0xff]
    %v183 = vld [vmem:[#allocation2 + $0x168] sm:$0xff]
    %v184 = vld [vmem:[#allocation2 + $0x170] sm:$0xff]
    %v185 = vld [vmem:[#allocation2 + $0x178] sm:$0xff]
    %v186 = vld [vmem:[#allocation2 + $0x180] sm:$0xff]
    %v187 = vld [vmem:[#allocation2 + $0x188] sm:$0xff]
    %v188 = vld [vmem:[#allocation2 + $0x190] sm:$0xff]
    %v189 = vld [vmem:[#allocation2 + $0x198] sm:$0xff]
    %v190 = vld [vmem:[#allocation2 + $0x1a0] sm:$0xff]
    %v191 = vld [vmem:[#allocation2 + $0x1a8] sm:$0xff]
    %v192 = vld [vmem:[#allocation2 + $0x1b0] sm:$0xff]
    %v193 = vld [vmem:[#allocation2 + $0x1b8] sm:$0xff]
    %v194 = vld [vmem:[#allocation2 + $0x1c0] sm:$0xff]
    %v195 = vld [vmem:[#allocation2 + $0x1c8] sm:$0xff]
    %v196 = vld [vmem:[#allocation2 + $0x1d0] sm:$0xff]
    %v197 = vld [vmem:[#allocation2 + $0x1d8] sm:$0xff]
    %v198 = vld [vmem:[#allocation2 + $0x1e0] sm:$0xff]
    %v199 = vld [vmem:[#allocation2 + $0x1e8] sm:$0xff]
    %v200 = vld [vmem:[#allocation2 + $0x1f0] sm:$0xff]
    %v201 = vld [vmem:[#allocation2 + $0x1f8] sm:$0xff]
    %v202 = vld [vmem:[#allocation3] sm:$0xff]
    %v203 = vld [vmem:[#allocation3 + $0x8] sm:$0xff]
    %v204 = vld [vmem:[#allocation3 + $0x10] sm:$0xff]
    %v205 = vld [vmem:[#allocation3 + $0x18] sm:$0xff]
    %v206 = vld [vmem:[#allocation3 + $0x20] sm:$0xff]
    %v207 = vld [vmem:[#allocation3 + $0x28] sm:$0xff]
    %v208 = vld [vmem:[#allocation3 + $0x30] sm:$0xff]
    %v209 = vld [vmem:[#allocation3 + $0x38] sm:$0xff]
    %v210 = vld [vmem:[#allocation3 + $0x40] sm:$0xff]
    %v211 = vld [vmem:[#allocation3 + $0x48] sm:$0xff]
    %v212 = vld [vmem:[#allocation3 + $0x50] sm:$0xff]
    %v213 = vld [vmem:[#allocation3 + $0x58] sm:$0xff]
    %v214 = vld [vmem:[#allocation3 + $0x60] sm:$0xff]
    %v215 = vld [vmem:[#allocation3 + $0x68] sm:$0xff]
    %v216 = vld [vmem:[#allocation3 + $0x70] sm:$0xff]
    %v217 = vld [vmem:[#allocation3 + $0x78] sm:$0xff]
    %v218 = vld [vmem:[#allocation3 + $0x80] sm:$0xff]
    %v219 = vld [vmem:[#allocation3 + $0x88] sm:$0xff]
    %v220 = vld [vmem:[#allocation3 + $0x90] sm:$0xff]
    %v221 = vld [vmem:[#allocation3 + $0x98] sm:$0xff]
    %v222 = vld [vmem:[#allocation3 + $0xa0] sm:$0xff]
    %v223 = vld [vmem:[#allocation3 + $0xa8] sm:$0xff]
    %v224 = vld [vmem:[#allocation3 + $0xb0] sm:$0xff]
    %v225 = vld [vmem:[#allocation3 + $0xb8] sm:$0xff]
    %v226 = vld [vmem:[#allocation3 + $0xc0] sm:$0xff]
    %v227 = vld [vmem:[#allocation3 + $0xc8] sm:$0xff]
    %v228 = vld [vmem:[#allocation3 + $0xd0] sm:$0xff]
    %v229 = vld [vmem:[#allocation3 + $0xd8] sm:$0xff]
    %v230 = vld [vmem:[#allocation3 + $0xe0] sm:$0xff]
    %v231 = vld [vmem:[#allocation3 + $0xe8] sm:$0xff]
    %v232 = vld [vmem:[#allocation3 + $0xf0] sm:$0xff]
    %v233 = vld [vmem:[#allocation3 + $0xf8] sm:$0xff]
    %v234 = vld [vmem:[#allocation3 + $0x100] sm:$0xff]
    %v235 = vld [vmem:[#allocation3 + $0x108] sm:$0xff]
    %v236 = vld [vmem:[#allocation3 + $0x110] sm:$0xff]
    %v237 = vld [vmem:[#allocation3 + $0x118] sm:$0xff]
    %v238 = vld [vmem:[#allocation3 + $0x120] sm:$0xff]
    %v239 = vld [vmem:[#allocation3 + $0x128] sm:$0xff]
    %v240 = vld [vmem:[#allocation3 + $0x130] sm:$0xff]
    %v241 = vld [vmem:[#allocation3 + $0x138] sm:$0xff]
    %v242 = vld [vmem:[#allocation3 + $0x140] sm:$0xff]
    %v243 = vld [vmem:[#allocation3 + $0x148] sm:$0xff]
    %v244 = vld [vmem:[#allocation3 + $0x150] sm:$0xff]
    %v245 = vld [vmem:[#allocation3 + $0x158] sm:$0xff]
    %v246 = vld [vmem:[#allocation3 + $0x160] sm:$0xff]
    %v247 = vld [vmem:[#allocation3 + $0x168] sm:$0xff]
    %v248 = vld [vmem:[#allocation3 + $0x170] sm:$0xff]
    %v249 = vld [vmem:[#allocation3 + $0x178] sm:$0xff]
    %v250 = vld [vmem:[#allocation3 + $0x180] sm:$0xff]
    %v251 = vld [vmem:[#allocation3 + $0x188] sm:$0xff]
    %v252 = vld [vmem:[#allocation3 + $0x190] sm:$0xff]
    %v253 = vld [vmem:[#allocation3 + $0x198] sm:$0xff]
    %v254 = vld [vmem:[#allocation3 + $0x1a0] sm:$0xff]
    %v255 = vld [vmem:[#allocation3 + $0x1a8] sm:$0xff]
    %v256 = vld [vmem:[#allocation3 + $0x1b0] sm:$0xff]
    %v257 = vld [vmem:[#allocation3 + $0x1b8] sm:$0xff]
    %v258 = vld [vmem:[#allocation3 + $0x1c0] sm:$0xff]
    %v259 = vld [vmem:[#allocation3 + $0x1c8] sm:$0xff]
    %v260 = vld [vmem:[#allocation3 + $0x1d0] sm:$0xff]
    %v261 = vld [vmem:[#allocation3 + $0x1d8] sm:$0xff]
    %v262 = vld [vmem:[#allocation3 + $0x1e0] sm:$0xff]
    %v263 = vld [vmem:[#allocation3 + $0x1e8] sm:$0xff]
    %v264 = vld [vmem:[#allocation3 + $0x1f0] sm:$0xff]
    %v265 = vld [vmem:[#allocation3 + $0x1f8] sm:$0xff]
    %v266 = vld [vmem:[#allocation6] sm:$0xf]
    %v267 = vld [vmem:[#allocation6 + $0x4] sm:$0xf]
    %v268 = vld [vmem:[#allocation6 + $0x8] sm:$0xf]
    %v269 = vld [vmem:[#allocation6 + $0xc] sm:$0xf]
    %v270 = vld [vmem:[#allocation6 + $0x10] sm:$0xf]
    %v271 = vld [vmem:[#allocation6 + $0x14] sm:$0xf]
    %v272 = vld [vmem:[#allocation6 + $0x18] sm:$0xf]
    %v273 = vld [vmem:[#allocation6 + $0x1c] sm:$0xf]
    %v274 = vld [vmem:[#allocation6 + $0x20] sm:$0xf]
    %v275 = vld [vmem:[#allocation6 + $0x24] sm:$0xf]
    %v276 = vld [vmem:[#allocation6 + $0x28] sm:$0xf]
    %v277 = vld [vmem:[#allocation6 + $0x2c] sm:$0xf]
    %v278 = vld [vmem:[#allocation6 + $0x30] sm:$0xf]
    %v279 = vld [vmem:[#allocation6 + $0x34] sm:$0xf]
    %v280 = vld [vmem:[#allocation6 + $0x38] sm:$0xf]
    %v281 = vld [vmem:[#allocation6 + $0x3c] sm:$0xf]
    %v282 = vld [vmem:[#allocation6 + $0x40] sm:$0xf]
    %v283 = vld [vmem:[#allocation6 + $0x44] sm:$0xf]
    %v284 = vld [vmem:[#allocation6 + $0x48] sm:$0xf]
    %v285 = vld [vmem:[#allocation6 + $0x4c] sm:$0xf]
    %v286 = vld [vmem:[#allocation6 + $0x50] sm:$0xf]
    %v287 = vld [vmem:[#allocation6 + $0x54] sm:$0xf]
    %v288 = vld [vmem:[#allocation6 + $0x58] sm:$0xf]
    %v289 = vld [vmem:[#allocation6 + $0x5c] sm:$0xf]
    %v290 = vld [vmem:[#allocation6 + $0x60] sm:$0xf]
    %v291 = vld [vmem:[#allocation6 + $0x64] sm:$0xf]
    %v292 = vld [vmem:[#allocation6 + $0x68] sm:$0xf]
    %v293 = vld [vmem:[#allocation6 + $0x6c] sm:$0xf]
    %v294 = vld [vmem:[#allocation6 + $0x70] sm:$0xf]
    %v295 = vld [vmem:[#allocation6 + $0x74] sm:$0xf]
    %v296 = vld [vmem:[#allocation6 + $0x78] sm:$0xf]
    %v297 = vld [vmem:[#allocation6 + $0x7c] sm:$0xf]
    %v362 = vunpack.c.l.b16 %v202
    %v363 = vunpack.c.h.b16 %v202
    %v364 = vunpack.c.l.b16 %v203
    %v365 = vunpack.c.h.b16 %v203
    %v366 = vunpack.c.l.b16 %v204
    %v367 = vunpack.c.h.b16 %v204
    %v368 = vunpack.c.l.b16 %v205
    %v369 = vunpack.c.h.b16 %v205
    %v370 = vunpack.c.l.b16 %v206
    %v371 = vunpack.c.h.b16 %v206
    %v372 = vunpack.c.l.b16 %v207
    %v373 = vunpack.c.h.b16 %v207
    %v374 = vunpack.c.l.b16 %v208
    %v375 = vunpack.c.h.b16 %v208
    %v376 = vunpack.c.l.b16 %v209
    %v377 = vunpack.c.h.b16 %v209
    %v378 = vunpack.c.l.b16 %v210
    %v379 = vunpack.c.h.b16 %v210
    %v380 = vunpack.c.l.b16 %v211
    %v381 = vunpack.c.h.b16 %v211
    %v382 = vunpack.c.l.b16 %v212
    %v383 = vunpack.c.h.b16 %v212
    %v384 = vunpack.c.l.b16 %v213
    %v385 = vunpack.c.h.b16 %v213
    %v386 = vunpack.c.l.b16 %v214
    %v387 = vunpack.c.h.b16 %v214
    %v388 = vunpack.c.l.b16 %v215
    %v389 = vunpack.c.h.b16 %v215
    %v390 = vunpack.c.l.b16 %v216
    %v391 = vunpack.c.h.b16 %v216
    %v392 = vunpack.c.l.b16 %v217
    %v393 = vunpack.c.h.b16 %v217
    %v394 = vunpack.c.l.b16 %v218
    %v395 = vunpack.c.h.b16 %v218
    %v396 = vunpack.c.l.b16 %v219
    %v397 = vunpack.c.h.b16 %v219
    %v398 = vunpack.c.l.b16 %v220
    %v399 = vunpack.c.h.b16 %v220
    %v400 = vunpack.c.l.b16 %v221
    %v401 = vunpack.c.h.b16 %v221
    %v402 = vunpack.c.l.b16 %v222
    %v403 = vunpack.c.h.b16 %v222
    %v404 = vunpack.c.l.b16 %v223
    %v405 = vunpack.c.h.b16 %v223
    %v406 = vunpack.c.l.b16 %v224
    %v407 = vunpack.c.h.b16 %v224
    %v408 = vunpack.c.l.b16 %v225
    %v409 = vunpack.c.h.b16 %v225
    %v410 = vunpack.c.l.b16 %v226
    %v411 = vunpack.c.h.b16 %v226
    %v412 = vunpack.c.l.b16 %v227
    %v413 = vunpack.c.h.b16 %v227
    %v414 = vunpack.c.l.b16 %v228
    %v415 = vunpack.c.h.b16 %v228
    %v416 = vunpack.c.l.b16 %v229
    %v417 = vunpack.c.h.b16 %v229
    %v418 = vunpack.c.l.b16 %v230
    %v419 = vunpack.c.h.b16 %v230
    %v420 = vunpack.c.l.b16 %v231
    %v421 = vunpack.c.h.b16 %v231
    %v422 = vunpack.c.l.b16 %v232
    %v423 = vunpack.c.h.b16 %v232
    %v424 = vunpack.c.l.b16 %v233
    %v425 = vunpack.c.h.b16 %v233
    %v426 = vunpack.c.l.b16 %v234
    %v427 = vunpack.c.h.b16 %v234
    %v428 = vunpack.c.l.b16 %v235
    %v429 = vunpack.c.h.b16 %v235
    %v430 = vunpack.c.l.b16 %v236
    %v431 = vunpack.c.h.b16 %v236
    %v432 = vunpack.c.l.b16 %v237
    %v433 = vunpack.c.h.b16 %v237
    %v434 = vunpack.c.l.b16 %v238
    %v435 = vunpack.c.h.b16 %v238
    %v436 = vunpack.c.l.b16 %v239
    %v437 = vunpack.c.h.b16 %v239
    %v438 = vunpack.c.l.b16 %v240
    %v439 = vunpack.c.h.b16 %v240
    %v440 = vunpack.c.l.b16 %v241
    %v441 = vunpack.c.h.b16 %v241
    %v442 = vunpack.c.l.b16 %v242
    %v443 = vunpack.c.h.b16 %v242
    %v444 = vunpack.c.l.b16 %v243
    %v445 = vunpack.c.h.b16 %v243
    %v446 = vunpack.c.l.b16 %v244
    %v447 = vunpack.c.h.b16 %v244
    %v448 = vunpack.c.l.b16 %v245
    %v449 = vunpack.c.h.b16 %v245
    %v450 = vunpack.c.l.b16 %v246
    %v451 = vunpack.c.h.b16 %v246
    %v452 = vunpack.c.l.b16 %v247
    %v453 = vunpack.c.h.b16 %v247
    %v454 = vunpack.c.l.b16 %v248
    %v455 = vunpack.c.h.b16 %v248
    %v456 = vunpack.c.l.b16 %v249
    %v457 = vunpack.c.h.b16 %v249
    %v458 = vunpack.c.l.b16 %v250
    %v459 = vunpack.c.h.b16 %v250
    %v460 = vunpack.c.l.b16 %v251
    %v461 = vunpack.c.h.b16 %v251
    %v462 = vunpack.c.l.b16 %v252
    %v463 = vunpack.c.h.b16 %v252
    %v464 = vunpack.c.l.b16 %v253
    %v465 = vunpack.c.h.b16 %v253
    %v466 = vunpack.c.l.b16 %v254
    %v467 = vunpack.c.h.b16 %v254
    %v468 = vunpack.c.l.b16 %v255
    %v469 = vunpack.c.h.b16 %v255
    %v470 = vunpack.c.l.b16 %v256
    %v471 = vunpack.c.h.b16 %v256
    %v472 = vunpack.c.l.b16 %v257
    %v473 = vunpack.c.h.b16 %v257
    %v474 = vunpack.c.l.b16 %v258
    %v475 = vunpack.c.h.b16 %v258
    %v476 = vunpack.c.l.b16 %v259
    %v477 = vunpack.c.h.b16 %v259
    %v478 = vunpack.c.l.b16 %v260
    %v479 = vunpack.c.h.b16 %v260
    %v480 = vunpack.c.l.b16 %v261
    %v481 = vunpack.c.h.b16 %v261
    %v482 = vunpack.c.l.b16 %v262
    %v483 = vunpack.c.h.b16 %v262
    %v484 = vunpack.c.l.b16 %v263
    %v485 = vunpack.c.h.b16 %v263
    %v486 = vunpack.c.l.b16 %v264
    %v487 = vunpack.c.h.b16 %v264
    %v488 = vunpack.c.l.b16 %v265
    %v489 = vunpack.c.h.b16 %v265
    %v490 = vpack.c.b16 %v364, %v362
    %v491 = vpack.c.b16 %v365, %v363
    %v492 = vpack.c.b16 %v368, %v366
    %v493 = vpack.c.b16 %v369, %v367
    %v494 = vpack.c.b16 %v372, %v370
    %v495 = vpack.c.b16 %v373, %v371
    %v496 = vpack.c.b16 %v376, %v374
    %v497 = vpack.c.b16 %v377, %v375
    %v498 = vpack.c.b16 %v380, %v378
    %v499 = vpack.c.b16 %v381, %v379
    %v500 = vpack.c.b16 %v384, %v382
    %v501 = vpack.c.b16 %v385, %v383
    %v502 = vpack.c.b16 %v388, %v386
    %v503 = vpack.c.b16 %v389, %v387
    %v504 = vpack.c.b16 %v392, %v390
    %v505 = vpack.c.b16 %v393, %v391
    %v506 = vpack.c.b16 %v396, %v394
    %v507 = vpack.c.b16 %v397, %v395
    %v508 = vpack.c.b16 %v400, %v398
    %v509 = vpack.c.b16 %v401, %v399
    %v510 = vpack.c.b16 %v404, %v402
    %v511 = vpack.c.b16 %v405, %v403
    %v512 = vpack.c.b16 %v408, %v406
    %v513 = vpack.c.b16 %v409, %v407
    %v514 = vpack.c.b16 %v412, %v410
    %v515 = vpack.c.b16 %v413, %v411
    %v516 = vpack.c.b16 %v416, %v414
    %v517 = vpack.c.b16 %v417, %v415
    %v518 = vpack.c.b16 %v420, %v418
    %v519 = vpack.c.b16 %v421, %v419
    %v520 = vpack.c.b16 %v424, %v422
    %v521 = vpack.c.b16 %v425, %v423
    %v522 = vpack.c.b16 %v428, %v426
    %v523 = vpack.c.b16 %v429, %v427
    %v524 = vpack.c.b16 %v432, %v430
    %v525 = vpack.c.b16 %v433, %v431
    %v526 = vpack.c.b16 %v436, %v434
    %v527 = vpack.c.b16 %v437, %v435
    %v528 = vpack.c.b16 %v440, %v438
    %v529 = vpack.c.b16 %v441, %v439
    %v530 = vpack.c.b16 %v444, %v442
    %v531 = vpack.c.b16 %v445, %v443
    %v532 = vpack.c.b16 %v448, %v446
    %v533 = vpack.c.b16 %v449, %v447
    %v534 = vpack.c.b16 %v452, %v450
    %v535 = vpack.c.b16 %v453, %v451
    %v536 = vpack.c.b16 %v456, %v454
    %v537 = vpack.c.b16 %v457, %v455
    %v538 = vpack.c.b16 %v460, %v458
    %v539 = vpack.c.b16 %v461, %v459
    %v540 = vpack.c.b16 %v464, %v462
    %v541 = vpack.c.b16 %v465, %v463
    %v542 = vpack.c.b16 %v468, %v466
    %v543 = vpack.c.b16 %v469, %v467
    %v544 = vpack.c.b16 %v472, %v470
    %v545 = vpack.c.b16 %v473, %v471
    %v546 = vpack.c.b16 %v476, %v474
    %v547 = vpack.c.b16 %v477, %v475
    %v548 = vpack.c.b16 %v480, %v478
    %v549 = vpack.c.b16 %v481, %v479
    %v550 = vpack.c.b16 %v484, %v482
    %v551 = vpack.c.b16 %v485, %v483
    %v552 = vpack.c.b16 %v488, %v486
    %v553 = vpack.c.b16 %v489, %v487
    %v650 = vunpack.c.l.b16 %v266
    %v651 = vunpack.c.l.b16 %v267
    %v652 = vunpack.c.l.b16 %v268
    %v653 = vunpack.c.l.b16 %v269
    %v654 = vunpack.c.l.b16 %v270
    %v655 = vunpack.c.l.b16 %v271
    %v656 = vunpack.c.l.b16 %v272
    %v657 = vunpack.c.l.b16 %v273
    %v658 = vunpack.c.l.b16 %v274
    %v659 = vunpack.c.l.b16 %v275
    %v660 = vunpack.c.l.b16 %v276
    %v661 = vunpack.c.l.b16 %v277
    %v662 = vunpack.c.l.b16 %v278
    %v663 = vunpack.c.l.b16 %v279
    %v664 = vunpack.c.l.b16 %v280
    %v665 = vunpack.c.l.b16 %v281
    %v666 = vunpack.c.l.b16 %v282
    %v667 = vunpack.c.l.b16 %v283
    %v668 = vunpack.c.l.b16 %v284
    %v669 = vunpack.c.l.b16 %v285
    %v670 = vunpack.c.l.b16 %v286
    %v671 = vunpack.c.l.b16 %v287
    %v672 = vunpack.c.l.b16 %v288
    %v673 = vunpack.c.l.b16 %v289
    %v674 = vunpack.c.l.b16 %v290
    %v675 = vunpack.c.l.b16 %v291
    %v676 = vunpack.c.l.b16 %v292
    %v677 = vunpack.c.l.b16 %v293
    %v678 = vunpack.c.l.b16 %v294
    %v679 = vunpack.c.l.b16 %v295
    %v680 = vunpack.c.l.b16 %v296
    %v681 = vunpack.c.l.b16 %v297
    %v682 = vpack.c.b16 %v651, %v650
    %v683 = vpack.c.b16 %v653, %v652
    %v684 = vpack.c.b16 %v655, %v654
    %v685 = vpack.c.b16 %v657, %v656
    %v686 = vpack.c.b16 %v659, %v658
    %v687 = vpack.c.b16 %v661, %v660
    %v688 = vpack.c.b16 %v663, %v662
    %v689 = vpack.c.b16 %v665, %v664
    %v690 = vpack.c.b16 %v667, %v666
    %v691 = vpack.c.b16 %v669, %v668
    %v692 = vpack.c.b16 %v671, %v670
    %v693 = vpack.c.b16 %v673, %v672
    %v694 = vpack.c.b16 %v675, %v674
    %v695 = vpack.c.b16 %v677, %v676
    %v696 = vpack.c.b16 %v679, %v678
    %v697 = vpack.c.b16 %v681, %v680
    %714 = vmatprep.subr.bf16.mxu0 0
    %715 = vmatpush1.bf16.msra.mxu0 %v682
    %716 = vmatprep.subr.bf16.mxu0 0
    %717 = vmatpush1.bf16.msra.mxu0 %v683
    %718 = vmatprep.subr.bf16.mxu0 0
    %719 = vmatpush1.bf16.msra.mxu0 %v684
    %720 = vmatprep.subr.bf16.mxu0 0
    %721 = vmatpush1.bf16.msra.mxu0 %v685
    %722 = vmatprep.subr.bf16.mxu0 0
    %723 = vmatpush1.bf16.msra.mxu0 %v686
    %724 = vmatprep.subr.bf16.mxu0 0
    %725 = vmatpush1.bf16.msra.mxu0 %v687
    %726 = vmatprep.subr.bf16.mxu0 0
    %727 = vmatpush1.bf16.msra.mxu0 %v688
    %728 = vmatprep.subr.bf16.mxu0 0
    %729 = vmatpush1.bf16.msra.mxu0 %v689
    %730 = vmatprep.subr.bf16.mxu0 0
    %731 = vmatpush1.bf16.msra.mxu0 %v690
    %732 = vmatprep.subr.bf16.mxu0 0
    %733 = vmatpush1.bf16.msra.mxu0 %v691
    %734 = vmatprep.subr.bf16.mxu0 0
    %735 = vmatpush1.bf16.msra.mxu0 %v692
    %736 = vmatprep.subr.bf16.mxu0 0
    %737 = vmatpush1.bf16.msra.mxu0 %v693
    %738 = vmatprep.subr.bf16.mxu0 0
    %739 = vmatpush1.bf16.msra.mxu0 %v694
    %740 = vmatprep.subr.bf16.mxu0 0
    %741 = vmatpush1.bf16.msra.mxu0 %v695
    %742 = vmatprep.subr.bf16.mxu0 0
    %743 = vmatpush1.bf16.msra.mxu0 %v696
    %744 = vmatprep.subr.bf16.mxu0 0
    %745 = vmatpush1.bf16.msra.mxu0 %v697
    %746 = vmatprep.mubr.bf16.mxu0 %v491
    %747 = vmatmul.mubr.bf16.gmra.mrb[0].mxu0 %v490
    %v748 = vpop.f32.mrb[0].mxu0
    %v749 = vadd.f32 0.0, %v748
    %v750 = vpop.f32.mrb[0].mxu0
    %v751 = vpop.f32.mrb[0].mxu0
    %v752 = vadd.f32 0.0, %v751
    %v753 = vpop.f32.mrb[0].mxu0
    %754 = vmatprep.mubr.bf16.mxu0 %v493
    %755 = vmatmul.mubr.bf16.gmra.mrb[0].mxu0 %v492
    %v756 = vpop.f32.mrb[0].mxu0
    %v757 = vadd.f32 0.0, %v756
    %v758 = vpop.f32.mrb[0].mxu0
    %v759 = vpop.f32.mrb[0].mxu0
    %v760 = vadd.f32 0.0, %v759
    %v761 = vpop.f32.mrb[0].mxu0
    %762 = vmatprep.mubr.bf16.mxu0 %v495
    %763 = vmatmul.mubr.bf16.gmra.mrb[0].mxu0 %v494
    %v764 = vpop.f32.mrb[0].mxu0
    %v765 = vadd.f32 0.0, %v764
    %v766 = vpop.f32.mrb[0].mxu0
    %v767 = vpop.f32.mrb[0].mxu0
    %v768 = vadd.f32 0.0, %v767
    %v769 = vpop.f32.mrb[0].mxu0
    %770 = vmatprep.mubr.bf16.mxu0 %v497
    %771 = vmatmul.mubr.bf16.gmra.mrb[0].mxu0 %v496
    %v772 = vpop.f32.mrb[0].mxu0
    %v773 = vadd.f32 0.0, %v772
    %v774 = vpop.f32.mrb[0].mxu0
    %v775 = vpop.f32.mrb[0].mxu0
    %v776 = vadd.f32 0.0, %v775
    %v777 = vpop.f32.mrb[0].mxu0
    %778 = vmatprep.mubr.bf16.mxu0 %v499
    %779 = vmatmul.mubr.bf16.gmra.mrb[0].mxu0 %v498
    %v780 = vpop.f32.mrb[0].mxu0
    %v781 = vadd.f32 0.0, %v780
    %v782 = vpop.f32.mrb[0].mxu0
    %v783 = vpop.f32.mrb[0].mxu0
    %v784 = vadd.f32 0.0, %v783
    %v785 = vpop.f32.mrb[0].mxu0
    %786 = vmatprep.mubr.bf16.mxu0 %v501
    %787 = vmatmul.mubr.bf16.gmra.mrb[0].mxu0 %v500
    %v788 = vpop.f32.mrb[0].mxu0
    %v789 = vadd.f32 0.0, %v788
    %v790 = vpop.f32.mrb[0].mxu0
    %v791 = vpop.f32.mrb[0].mxu0
    %v792 = vadd.f32 0.0, %v791
    %v793 = vpop.f32.mrb[0].mxu0
    %794 = vmatprep.mubr.bf16.mxu0 %v503
    %795 = vmatmul.mubr.bf16.gmra.mrb[0].mxu0 %v502
    %v796 = vpop.f32.mrb[0].mxu0
    %v797 = vadd.f32 0.0, %v796
    %v798 = vpop.f32.mrb[0].mxu0
    %v799 = vpop.f32.mrb[0].mxu0
    %v800 = vadd.f32 0.0, %v799
    %v801 = vpop.f32.mrb[0].mxu0
    %802 = vmatprep.mubr.bf16.mxu0 %v505
    %803 = vmatmul.mubr.bf16.gmra.mrb[0].mxu0 %v504
    %v804 = vpop.f32.mrb[0].mxu0
    %v805 = vadd.f32 0.0, %v804
    %v806 = vpop.f32.mrb[0].mxu0
    %v807 = vpop.f32.mrb[0].mxu0
    %v808 = vadd.f32 0.0, %v807
    %v809 = vpop.f32.mrb[0].mxu0
    %810 = vmatprep.mubr.bf16.mxu0 %v507
    %811 = vmatmul.mubr.bf16.gmra.mrb[0].mxu0 %v506
    %v812 = vpop.f32.mrb[0].mxu0
    %v813 = vadd.f32 0.0, %v812
    %v814 = vpop.f32.mrb[0].mxu0
    %v815 = vpop.f32.mrb[0].mxu0
    %v816 = vadd.f32 0.0, %v815
    %v817 = vpop.f32.mrb[0].mxu0
    %818 = vmatprep.mubr.bf16.mxu0 %v509
    %819 = vmatmul.mubr.bf16.gmra.mrb[0].mxu0 %v508
    %v820 = vpop.f32.mrb[0].mxu0
    %v821 = vadd.f32 0.0, %v820
    %v822 = vpop.f32.mrb[0].mxu0
    %v823 = vpop.f32.mrb[0].mxu0
    %v824 = vadd.f32 0.0, %v823
    %v825 = vpop.f32.mrb[0].mxu0
    %826 = vmatprep.mubr.bf16.mxu0 %v511
    %827 = vmatmul.mubr.bf16.gmra.mrb[0].mxu0 %v510
    %v828 = vpop.f32.mrb[0].mxu0
    %v829 = vadd.f32 0.0, %v828
    %v830 = vpop.f32.mrb[0].mxu0
    %v831 = vpop.f32.mrb[0].mxu0
    %v832 = vadd.f32 0.0, %v831
    %v833 = vpop.f32.mrb[0].mxu0
    %834 = vmatprep.mubr.bf16.mxu0 %v513
    %835 = vmatmul.mubr.bf16.gmra.mrb[0].mxu0 %v512
    %v836 = vpop.f32.mrb[0].mxu0
    %v837 = vadd.f32 0.0, %v836
    %v838 = vpop.f32.mrb[0].mxu0
    %v839 = vpop.f32.mrb[0].mxu0
    %v840 = vadd.f32 0.0, %v839
    %v841 = vpop.f32.mrb[0].mxu0
    %842 = vmatprep.mubr.bf16.mxu0 %v515
    %843 = vmatmul.mubr.bf16.gmra.mrb[0].mxu0 %v514
    %v844 = vpop.f32.mrb[0].mxu0
    %v845 = vadd.f32 0.0, %v844
    %v846 = vpop.f32.mrb[0].mxu0
    %v847 = vpop.f32.mrb[0].mxu0
    %v848 = vadd.f32 0.0, %v847
    %v849 = vpop.f32.mrb[0].mxu0
    %850 = vmatprep.mubr.bf16.mxu0 %v517
    %851 = vmatmul.mubr.bf16.gmra.mrb[0].mxu0 %v516
    %v852 = vpop.f32.mrb[0].mxu0
    %v853 = vadd.f32 0.0, %v852
    %v854 = vpop.f32.mrb[0].mxu0
    %v855 = vpop.f32.mrb[0].mxu0
    %v856 = vadd.f32 0.0, %v855
    %v857 = vpop.f32.mrb[0].mxu0
    %858 = vmatprep.mubr.bf16.mxu0 %v519
    %859 = vmatmul.mubr.bf16.gmra.mrb[0].mxu0 %v518
    %v860 = vpop.f32.mrb[0].mxu0
    %v861 = vadd.f32 0.0, %v860
    %v862 = vpop.f32.mrb[0].mxu0
    %v863 = vpop.f32.mrb[0].mxu0
    %v864 = vadd.f32 0.0, %v863
    %v865 = vpop.f32.mrb[0].mxu0
    %866 = vmatprep.mubr.bf16.mxu0 %v521
    %867 = vmatmul.mubr.bf16.gmra.mrb[0].mxu0 %v520
    %v868 = vpop.f32.mrb[0].mxu0
    %v869 = vadd.f32 0.0, %v868
    %v870 = vpop.f32.mrb[0].mxu0
    %v871 = vpop.f32.mrb[0].mxu0
    %v872 = vadd.f32 0.0, %v871
    %v873 = vpop.f32.mrb[0].mxu0
    %874 = vmatprep.mubr.bf16.mxu0 %v523
    %875 = vmatmul.mubr.bf16.gmra.mrb[0].mxu0 %v522
    %v876 = vpop.f32.mrb[0].mxu0
    %v877 = vadd.f32 0.0, %v876
    %v878 = vpop.f32.mrb[0].mxu0
    %v879 = vpop.f32.mrb[0].mxu0
    %v880 = vadd.f32 0.0, %v879
    %v881 = vpop.f32.mrb[0].mxu0
    %882 = vmatprep.mubr.bf16.mxu0 %v525
    %883 = vmatmul.mubr.bf16.gmra.mrb[0].mxu0 %v524
    %v884 = vpop.f32.mrb[0].mxu0
    %v885 = vadd.f32 0.0, %v884
    %v886 = vpop.f32.mrb[0].mxu0
    %v887 = vpop.f32.mrb[0].mxu0
    %v888 = vadd.f32 0.0, %v887
    %v889 = vpop.f32.mrb[0].mxu0
    %890 = vmatprep.mubr.bf16.mxu0 %v527
    %891 = vmatmul.mubr.bf16.gmra.mrb[0].mxu0 %v526
    %v892 = vpop.f32.mrb[0].mxu0
    %v893 = vadd.f32 0.0, %v892
    %v894 = vpop.f32.mrb[0].mxu0
    %v895 = vpop.f32.mrb[0].mxu0
    %v896 = vadd.f32 0.0, %v895
    %v897 = vpop.f32.mrb[0].mxu0
    %898 = vmatprep.mubr.bf16.mxu0 %v529
    %899 = vmatmul.mubr.bf16.gmra.mrb[0].mxu0 %v528
    %v900 = vpop.f32.mrb[0].mxu0
    %v901 = vadd.f32 0.0, %v900
    %v902 = vpop.f32.mrb[0].mxu0
    %v903 = vpop.f32.mrb[0].mxu0
    %v904 = vadd.f32 0.0, %v903
    %v905 = vpop.f32.mrb[0].mxu0
    %906 = vmatprep.mubr.bf16.mxu0 %v531
    %907 = vmatmul.mubr.bf16.gmra.mrb[0].mxu0 %v530
    %v908 = vpop.f32.mrb[0].mxu0
    %v909 = vadd.f32 0.0, %v908
    %v910 = vpop.f32.mrb[0].mxu0
    %v911 = vpop.f32.mrb[0].mxu0
    %v912 = vadd.f32 0.0, %v911
    %v913 = vpop.f32.mrb[0].mxu0
    %914 = vmatprep.mubr.bf16.mxu0 %v533
    %915 = vmatmul.mubr.bf16.gmra.mrb[0].mxu0 %v532
    %v916 = vpop.f32.mrb[0].mxu0
    %v917 = vadd.f32 0.0, %v916
    %v918 = vpop.f32.mrb[0].mxu0
    %v919 = vpop.f32.mrb[0].mxu0
    %v920 = vadd.f32 0.0, %v919
    %v921 = vpop.f32.mrb[0].mxu0
    %922 = vmatprep.mubr.bf16.mxu0 %v535
    %923 = vmatmul.mubr.bf16.gmra.mrb[0].mxu0 %v534
    %v924 = vpop.f32.mrb[0].mxu0
    %v925 = vadd.f32 0.0, %v924
    %v926 = vpop.f32.mrb[0].mxu0
    %v927 = vpop.f32.mrb[0].mxu0
    %v928 = vadd.f32 0.0, %v927
    %v929 = vpop.f32.mrb[0].mxu0
    %930 = vmatprep.mubr.bf16.mxu0 %v537
    %931 = vmatmul.mubr.bf16.gmra.mrb[0].mxu0 %v536
    %v932 = vpop.f32.mrb[0].mxu0
    %v933 = vadd.f32 0.0, %v932
    %v934 = vpop.f32.mrb[0].mxu0
    %v935 = vpop.f32.mrb[0].mxu0
    %v936 = vadd.f32 0.0, %v935
    %v937 = vpop.f32.mrb[0].mxu0
    %938 = vmatprep.mubr.bf16.mxu0 %v539
    %939 = vmatmul.mubr.bf16.gmra.mrb[0].mxu0 %v538
    %v940 = vpop.f32.mrb[0].mxu0
    %v941 = vadd.f32 0.0, %v940
    %v942 = vpop.f32.mrb[0].mxu0
    %v943 = vpop.f32.mrb[0].mxu0
    %v944 = vadd.f32 0.0, %v943
    %v945 = vpop.f32.mrb[0].mxu0
    %946 = vmatprep.mubr.bf16.mxu0 %v541
    %947 = vmatmul.mubr.bf16.gmra.mrb[0].mxu0 %v540
    %v948 = vpop.f32.mrb[0].mxu0
    %v949 = vadd.f32 0.0, %v948
    %v950 = vpop.f32.mrb[0].mxu0
    %v951 = vpop.f32.mrb[0].mxu0
    %v952 = vadd.f32 0.0, %v951
    %v953 = vpop.f32.mrb[0].mxu0
    %954 = vmatprep.mubr.bf16.mxu0 %v543
    %955 = vmatmul.mubr.bf16.gmra.mrb[0].mxu0 %v542
    %v956 = vpop.f32.mrb[0].mxu0
    %v957 = vadd.f32 0.0, %v956
    %v958 = vpop.f32.mrb[0].mxu0
    %v959 = vpop.f32.mrb[0].mxu0
    %v960 = vadd.f32 0.0, %v959
    %v961 = vpop.f32.mrb[0].mxu0
    %962 = vmatprep.mubr.bf16.mxu0 %v545
    %963 = vmatmul.mubr.bf16.gmra.mrb[0].mxu0 %v544
    %v964 = vpop.f32.mrb[0].mxu0
    %v965 = vadd.f32 0.0, %v964
    %v966 = vpop.f32.mrb[0].mxu0
    %v967 = vpop.f32.mrb[0].mxu0
    %v968 = vadd.f32 0.0, %v967
    %v969 = vpop.f32.mrb[0].mxu0
    %970 = vmatprep.mubr.bf16.mxu0 %v547
    %971 = vmatmul.mubr.bf16.gmra.mrb[0].mxu0 %v546
    %v972 = vpop.f32.mrb[0].mxu0
    %v973 = vadd.f32 0.0, %v972
    %v974 = vpop.f32.mrb[0].mxu0
    %v975 = vpop.f32.mrb[0].mxu0
    %v976 = vadd.f32 0.0, %v975
    %v977 = vpop.f32.mrb[0].mxu0
    %978 = vmatprep.mubr.bf16.mxu0 %v549
    %979 = vmatmul.mubr.bf16.gmra.mrb[0].mxu0 %v548
    %v980 = vpop.f32.mrb[0].mxu0
    %v981 = vadd.f32 0.0, %v980
    %v982 = vpop.f32.mrb[0].mxu0
    %v983 = vpop.f32.mrb[0].mxu0
    %v984 = vadd.f32 0.0, %v983
    %v985 = vpop.f32.mrb[0].mxu0
    %986 = vmatprep.mubr.bf16.mxu0 %v551
    %987 = vmatmul.mubr.bf16.gmra.mrb[0].mxu0 %v550
    %v988 = vpop.f32.mrb[0].mxu0
    %v989 = vadd.f32 0.0, %v988
    %v990 = vpop.f32.mrb[0].mxu0
    %v991 = vpop.f32.mrb[0].mxu0
    %v992 = vadd.f32 0.0, %v991
    %v993 = vpop.f32.mrb[0].mxu0
    %994 = vmatprep.mubr.bf16.mxu0 %v553
    %995 = vmatmul.mubr.bf16.gmra.mrb[0].mxu0 %v552
    %v996 = vpop.f32.mrb[0].mxu0
    %v997 = vadd.f32 0.0, %v996
    %v998 = vpop.f32.mrb[0].mxu0
    %v999 = vpop.f32.mrb[0].mxu0
    %v1000 = vadd.f32 0.0, %v999
    %v1001 = vpop.f32.mrb[0].mxu0
    %1002 = vdwg.mxu0
    %v1003 = vadd.f32 %v138, %v749
    %v1004 = vadd.f32 %v139, %v752
    %v1005 = vadd.f32 %v140, %v757
    %v1006 = vadd.f32 %v141, %v760
    %v1007 = vadd.f32 %v142, %v765
    %v1008 = vadd.f32 %v143, %v768
    %v1009 = vadd.f32 %v144, %v773
    %v1010 = vadd.f32 %v145, %v776
    %v1011 = vadd.f32 %v146, %v781
    %v1012 = vadd.f32 %v147, %v784
    %v1013 = vadd.f32 %v148, %v789
    %v1014 = vadd.f32 %v149, %v792
    %v1015 = vadd.f32 %v150, %v797
    %v1016 = vadd.f32 %v151, %v800
    %v1017 = vadd.f32 %v152, %v805
    %v1018 = vadd.f32 %v153, %v808
    %v1019 = vadd.f32 %v154, %v813
    %v1020 = vadd.f32 %v155, %v816
    %v1021 = vadd.f32 %v156, %v821
    %v1022 = vadd.f32 %v157, %v824
    %v1023 = vadd.f32 %v158, %v829
    %v1024 = vadd.f32 %v159, %v832
    %v1025 = vadd.f32 %v160, %v837
    %v1026 = vadd.f32 %v161, %v840
    %v1027 = vadd.f32 %v162, %v845
    %v1028 = vadd.f32 %v163, %v848
    %v1029 = vadd.f32 %v164, %v853
    %v1030 = vadd.f32 %v165, %v856
    %v1031 = vadd.f32 %v166, %v861
    %v1032 = vadd.f32 %v167, %v864
    %v1033 = vadd.f32 %v168, %v869
    %v1034 = vadd.f32 %v169, %v872
    %v1035 = vadd.f32 %v170, %v877
    %v1036 = vadd.f32 %v171, %v880
    %v1037 = vadd.f32 %v172, %v885
    %v1038 = vadd.f32 %v173, %v888
    %v1039 = vadd.f32 %v174, %v893
    %v1040 = vadd.f32 %v175, %v896
    %v1041 = vadd.f32 %v176, %v901
    %v1042 = vadd.f32 %v177, %v904
    %v1043 = vadd.f32 %v178, %v909
    %v1044 = vadd.f32 %v179, %v912
    %v1045 = vadd.f32 %v180, %v917
    %v1046 = vadd.f32 %v181, %v920
    %v1047 = vadd.f32 %v182, %v925
    %v1048 = vadd.f32 %v183, %v928
    %v1049 = vadd.f32 %v184, %v933
    %v1050 = vadd.f32 %v185, %v936
    %v1051 = vadd.f32 %v186, %v941
    %v1052 = vadd.f32 %v187, %v944
    %v1053 = vadd.f32 %v188, %v949
    %v1054 = vadd.f32 %v189, %v952
    %v1055 = vadd.f32 %v190, %v957
    %v1056 = vadd.f32 %v191, %v960
    %v1057 = vadd.f32 %v192, %v965
    %v1058 = vadd.f32 %v193, %v968
    %v1059 = vadd.f32 %v194, %v973
    %v1060 = vadd.f32 %v195, %v976
    %v1061 = vadd.f32 %v196, %v981
    %v1062 = vadd.f32 %v197, %v984
    %v1063 = vadd.f32 %v198, %v989
    %v1064 = vadd.f32 %v199, %v992
    %v1065 = vadd.f32 %v200, %v997
    %v1066 = vadd.f32 %v201, %v1000
    %1067 = vst [vmem:[#allocation2] sm:$0xff] %v1003
    %1068 = vst [vmem:[#allocation2 + $0x8] sm:$0xff] %v1004
    %1069 = vst [vmem:[#allocation2 + $0x10] sm:$0xff] %v1005
    %1070 = vst [vmem:[#allocation2 + $0x18] sm:$0xff] %v1006
    %1071 = vst [vmem:[#allocation2 + $0x20] sm:$0xff] %v1007
    %1072 = vst [vmem:[#allocation2 + $0x28] sm:$0xff] %v1008
    %1073 = vst [vmem:[#allocation2 + $0x30] sm:$0xff] %v1009
    %1074 = vst [vmem:[#allocation2 + $0x38] sm:$0xff] %v1010
    %1075 = vst [vmem:[#allocation2 + $0x40] sm:$0xff] %v1011
    %1076 = vst [vmem:[#allocation2 + $0x48] sm:$0xff] %v1012
    %1077 = vst [vmem:[#allocation2 + $0x50] sm:$0xff] %v1013
    %1078 = vst [vmem:[#allocation2 + $0x58] sm:$0xff] %v1014
    %1079 = vst [vmem:[#allocation2 + $0x60] sm:$0xff] %v1015
    %1080 = vst [vmem:[#allocation2 + $0x68] sm:$0xff] %v1016
    %1081 = vst [vmem:[#allocation2 + $0x70] sm:$0xff] %v1017
    %1082 = vst [vmem:[#allocation2 + $0x78] sm:$0xff] %v1018
    %1083 = vst [vmem:[#allocation2 + $0x80] sm:$0xff] %v1019
    %1084 = vst [vmem:[#allocation2 + $0x88] sm:$0xff] %v1020
    %1085 = vst [vmem:[#allocation2 + $0x90] sm:$0xff] %v1021
    %1086 = vst [vmem:[#allocation2 + $0x98] sm:$0xff] %v1022
    %1087 = vst [vmem:[#allocation2 + $0xa0] sm:$0xff] %v1023
    %1088 = vst [vmem:[#allocation2 + $0xa8] sm:$0xff] %v1024
    %1089 = vst [vmem:[#allocation2 + $0xb0] sm:$0xff] %v1025
    %1090 = vst [vmem:[#allocation2 + $0xb8] sm:$0xff] %v1026
    %1091 = vst [vmem:[#allocation2 + $0xc0] sm:$0xff] %v1027
    %1092 = vst [vmem:[#allocation2 + $0xc8] sm:$0xff] %v1028
    %1093 = vst [vmem:[#allocation2 + $0xd0] sm:$0xff] %v1029
    %1094 = vst [vmem:[#allocation2 + $0xd8] sm:$0xff] %v1030
    %1095 = vst [vmem:[#allocation2 + $0xe0] sm:$0xff] %v1031
    %1096 = vst [vmem:[#allocation2 + $0xe8] sm:$0xff] %v1032
    %1097 = vst [vmem:[#allocation2 + $0xf0] sm:$0xff] %v1033
    %1098 = vst [vmem:[#allocation2 + $0xf8] sm:$0xff] %v1034
    %1099 = vst [vmem:[#allocation2 + $0x100] sm:$0xff] %v1035
    %1100 = vst [vmem:[#allocation2 + $0x108] sm:$0xff] %v1036
    %1101 = vst [vmem:[#allocation2 + $0x110] sm:$0xff] %v1037
    %1102 = vst [vmem:[#allocation2 + $0x118] sm:$0xff] %v1038
    %1103 = vst [vmem:[#allocation2 + $0x120] sm:$0xff] %v1039
    %1104 = vst [vmem:[#allocation2 + $0x128] sm:$0xff] %v1040
    %1105 = vst [vmem:[#allocation2 + $0x130] sm:$0xff] %v1041
    %1106 = vst [vmem:[#allocation2 + $0x138] sm:$0xff] %v1042
    %1107 = vst [vmem:[#allocation2 + $0x140] sm:$0xff] %v1043
    %1108 = vst [vmem:[#allocation2 + $0x148] sm:$0xff] %v1044
    %1109 = vst [vmem:[#allocation2 + $0x150] sm:$0xff] %v1045
    %1110 = vst [vmem:[#allocation2 + $0x158] sm:$0xff] %v1046
    %1111 = vst [vmem:[#allocation2 + $0x160] sm:$0xff] %v1047
    %1112 = vst [vmem:[#allocation2 + $0x168] sm:$0xff] %v1048
    %1113 = vst [vmem:[#allocation2 + $0x170] sm:$0xff] %v1049
    %1114 = vst [vmem:[#allocation2 + $0x178] sm:$0xff] %v1050
    %1115 = vst [vmem:[#allocation2 + $0x180] sm:$0xff] %v1051
    %1116 = vst [vmem:[#allocation2 + $0x188] sm:$0xff] %v1052
    %1117 = vst [vmem:[#allocation2 + $0x190] sm:$0xff] %v1053
    %1118 = vst [vmem:[#allocation2 + $0x198] sm:$0xff] %v1054
    %1119 = vst [vmem:[#allocation2 + $0x1a0] sm:$0xff] %v1055
    %1120 = vst [vmem:[#allocation2 + $0x1a8] sm:$0xff] %v1056
    %1121 = vst [vmem:[#allocation2 + $0x1b0] sm:$0xff] %v1057
    %1122 = vst [vmem:[#allocation2 + $0x1b8] sm:$0xff] %v1058
    %1123 = vst [vmem:[#allocation2 + $0x1c0] sm:$0xff] %v1059
    %1124 = vst [vmem:[#allocation2 + $0x1c8] sm:$0xff] %v1060
    %1125 = vst [vmem:[#allocation2 + $0x1d0] sm:$0xff] %v1061
    %1126 = vst [vmem:[#allocation2 + $0x1d8] sm:$0xff] %v1062
    %1127 = vst [vmem:[#allocation2 + $0x1e0] sm:$0xff] %v1063
    %1128 = vst [vmem:[#allocation2 + $0x1e8] sm:$0xff] %v1064
    %1129 = vst [vmem:[#allocation2 + $0x1f0] sm:$0xff] %v1065
    %1130 = vst [vmem:[#allocation2 + $0x1f8] sm:$0xff] %v1066
    // Predicated region
    $region38: #{tpu_custom_call.1} parent=1 // pred_check
      %p1131 = pneg %p70
    $region39: #{tpu_custom_call.1} parent=1 // pred_check_branch
      %1133 = sbr.rel (%p1131) target = $region41
    $region40: #{tpu_custom_call.1} parent=1 // pred_region
      %v1134 = vld [vmem:[#allocation2] sm:$0xff]
      %v1135 = vld [vmem:[#allocation2 + $0x8] sm:$0xff]
      %v1136 = vld [vmem:[#allocation2 + $0x10] sm:$0xff]
      %v1137 = vld [vmem:[#allocation2 + $0x18] sm:$0xff]
      %v1138 = vld [vmem:[#allocation2 + $0x20] sm:$0xff]
      %v1139 = vld [vmem:[#allocation2 + $0x28] sm:$0xff]
      %v1140 = vld [vmem:[#allocation2 + $0x30] sm:$0xff]
      %v1141 = vld [vmem:[#allocation2 + $0x38] sm:$0xff]
      %v1142 = vld [vmem:[#allocation2 + $0x40] sm:$0xff]
      %v1143 = vld [vmem:[#allocation2 + $0x48] sm:$0xff]
      %v1144 = vld [vmem:[#allocation2 + $0x50] sm:$0xff]
      %v1145 = vld [vmem:[#allocation2 + $0x58] sm:$0xff]
      %v1146 = vld [vmem:[#allocation2 + $0x60] sm:$0xff]
      %v1147 = vld [vmem:[#allocation2 + $0x68] sm:$0xff]
      %v1148 = vld [vmem:[#allocation2 + $0x70] sm:$0xff]
      %v1149 = vld [vmem:[#allocation2 + $0x78] sm:$0xff]
      %v1150 = vld [vmem:[#allocation2 + $0x80] sm:$0xff]
      %v1151 = vld [vmem:[#allocation2 + $0x88] sm:$0xff]
      %v1152 = vld [vmem:[#allocation2 + $0x90] sm:$0xff]
      %v1153 = vld [vmem:[#allocation2 + $0x98] sm:$0xff]
      %v1154 = vld [vmem:[#allocation2 + $0xa0] sm:$0xff]
      %v1155 = vld [vmem:[#allocation2 + $0xa8] sm:$0xff]
      %v1156 = vld [vmem:[#allocation2 + $0xb0] sm:$0xff]
      %v1157 = vld [vmem:[#allocation2 + $0xb8] sm:$0xff]
      %v1158 = vld [vmem:[#allocation2 + $0xc0] sm:$0xff]
      %v1159 = vld [vmem:[#allocation2 + $0xc8] sm:$0xff]
      %v1160 = vld [vmem:[#allocation2 + $0xd0] sm:$0xff]
      %v1161 = vld [vmem:[#allocation2 + $0xd8] sm:$0xff]
      %v1162 = vld [vmem:[#allocation2 + $0xe0] sm:$0xff]
      %v1163 = vld [vmem:[#allocation2 + $0xe8] sm:$0xff]
      %v1164 = vld [vmem:[#allocation2 + $0xf0] sm:$0xff]
      %v1165 = vld [vmem:[#allocation2 + $0xf8] sm:$0xff]
      %v1166 = vld [vmem:[#allocation2 + $0x100] sm:$0xff]
      %v1167 = vld [vmem:[#allocation2 + $0x108] sm:$0xff]
      %v1168 = vld [vmem:[#allocation2 + $0x110] sm:$0xff]
      %v1169 = vld [vmem:[#allocation2 + $0x118] sm:$0xff]
      %v1170 = vld [vmem:[#allocation2 + $0x120] sm:$0xff]
      %v1171 = vld [vmem:[#allocation2 + $0x128] sm:$0xff]
      %v1172 = vld [vmem:[#allocation2 + $0x130] sm:$0xff]
      %v1173 = vld [vmem:[#allocation2 + $0x138] sm:$0xff]
      %v1174 = vld [vmem:[#allocation2 + $0x140] sm:$0xff]
      %v1175 = vld [vmem:[#allocation2 + $0x148] sm:$0xff]
      %v1176 = vld [vmem:[#allocation2 + $0x150] sm:$0xff]
      %v1177 = vld [vmem:[#allocation2 + $0x158] sm:$0xff]
      %v1178 = vld [vmem:[#allocation2 + $0x160] sm:$0xff]
      %v1179 = vld [vmem:[#allocation2 + $0x168] sm:$0xff]
      %v1180 = vld [vmem:[#allocation2 + $0x170] sm:$0xff]
      %v1181 = vld [vmem:[#allocation2 + $0x178] sm:$0xff]
      %v1182 = vld [vmem:[#allocation2 + $0x180] sm:$0xff]
      %v1183 = vld [vmem:[#allocation2 + $0x188] sm:$0xff]
      %v1184 = vld [vmem:[#allocation2 + $0x190] sm:$0xff]
      %v1185 = vld [vmem:[#allocation2 + $0x198] sm:$0xff]
      %v1186 = vld [vmem:[#allocation2 + $0x1a0] sm:$0xff]
      %v1187 = vld [vmem:[#allocation2 + $0x1a8] sm:$0xff]
      %v1188 = vld [vmem:[#allocation2 + $0x1b0] sm:$0xff]
      %v1189 = vld [vmem:[#allocation2 + $0x1b8] sm:$0xff]
      %v1190 = vld [vmem:[#allocation2 + $0x1c0] sm:$0xff]
      %v1191 = vld [vmem:[#allocation2 + $0x1c8] sm:$0xff]
      %v1192 = vld [vmem:[#allocation2 + $0x1d0] sm:$0xff]
      %v1193 = vld [vmem:[#allocation2 + $0x1d8] sm:$0xff]
      %v1194 = vld [vmem:[#allocation2 + $0x1e0] sm:$0xff]
      %v1195 = vld [vmem:[#allocation2 + $0x1e8] sm:$0xff]
      %v1196 = vld [vmem:[#allocation2 + $0x1f0] sm:$0xff]
      %v1197 = vld [vmem:[#allocation2 + $0x1f8] sm:$0xff]
      %v1198 = vld [vmem:[#allocation8] sm:$0x1]
      %v1200 = vlaneseq
      %v1201 = vshrl.u32 %v1200, 7
      %v1202 = vsub.s32 0, %v1201
      %v1203 = vrot.slane %v1198, %v1202
      %v1205 = vmul.f32 %v1134, %v1203
      %v1206 = vmul.f32 %v1135, %v1203
      %v1207 = vmul.f32 %v1136, %v1203
      %v1208 = vmul.f32 %v1137, %v1203
      %v1209 = vmul.f32 %v1138, %v1203
      %v1210 = vmul.f32 %v1139, %v1203
      %v1211 = vmul.f32 %v1140, %v1203
      %v1212 = vmul.f32 %v1141, %v1203
      %v1213 = vmul.f32 %v1142, %v1203
      %v1214 = vmul.f32 %v1143, %v1203
      %v1215 = vmul.f32 %v1144, %v1203
      %v1216 = vmul.f32 %v1145, %v1203
      %v1217 = vmul.f32 %v1146, %v1203
      %v1218 = vmul.f32 %v1147, %v1203
      %v1219 = vmul.f32 %v1148, %v1203
      %v1220 = vmul.f32 %v1149, %v1203
      %v1221 = vmul.f32 %v1150, %v1203
      %v1222 = vmul.f32 %v1151, %v1203
      %v1223 = vmul.f32 %v1152, %v1203
      %v1224 = vmul.f32 %v1153, %v1203
      %v1225 = vmul.f32 %v1154, %v1203
      %v1226 = vmul.f32 %v1155, %v1203
      %v1227 = vmul.f32 %v1156, %v1203
      %v1228 = vmul.f32 %v1157, %v1203
      %v1229 = vmul.f32 %v1158, %v1203
      %v1230 = vmul.f32 %v1159, %v1203
      %v1231 = vmul.f32 %v1160, %v1203
      %v1232 = vmul.f32 %v1161, %v1203
      %v1233 = vmul.f32 %v1162, %v1203
      %v1234 = vmul.f32 %v1163, %v1203
      %v1235 = vmul.f32 %v1164, %v1203
      %v1236 = vmul.f32 %v1165, %v1203
      %v1237 = vmul.f32 %v1166, %v1203
      %v1238 = vmul.f32 %v1167, %v1203
      %v1239 = vmul.f32 %v1168, %v1203
      %v1240 = vmul.f32 %v1169, %v1203
      %v1241 = vmul.f32 %v1170, %v1203
      %v1242 = vmul.f32 %v1171, %v1203
      %v1243 = vmul.f32 %v1172, %v1203
      %v1244 = vmul.f32 %v1173, %v1203
      %v1245 = vmul.f32 %v1174, %v1203
      %v1246 = vmul.f32 %v1175, %v1203
      %v1247 = vmul.f32 %v1176, %v1203
      %v1248 = vmul.f32 %v1177, %v1203
      %v1249 = vmul.f32 %v1178, %v1203
      %v1250 = vmul.f32 %v1179, %v1203
      %v1251 = vmul.f32 %v1180, %v1203
      %v1252 = vmul.f32 %v1181, %v1203
      %v1253 = vmul.f32 %v1182, %v1203
      %v1254 = vmul.f32 %v1183, %v1203
      %v1255 = vmul.f32 %v1184, %v1203
      %v1256 = vmul.f32 %v1185, %v1203
      %v1257 = vmul.f32 %v1186, %v1203
      %v1258 = vmul.f32 %v1187, %v1203
      %v1259 = vmul.f32 %v1188, %v1203
      %v1260 = vmul.f32 %v1189, %v1203
      %v1261 = vmul.f32 %v1190, %v1203
      %v1262 = vmul.f32 %v1191, %v1203
      %v1263 = vmul.f32 %v1192, %v1203
      %v1264 = vmul.f32 %v1193, %v1203
      %v1265 = vmul.f32 %v1194, %v1203
      %v1266 = vmul.f32 %v1195, %v1203
      %v1267 = vmul.f32 %v1196, %v1203
      %v1268 = vmul.f32 %v1197, %v1203
      %v1269 = vld [vmem:[#allocation9] sm:$0x1]
      %v1271 = vlaneseq
      %v1272 = vshrl.u32 %v1271, 7
      %v1273 = vsub.s32 0, %v1272
      %v1274 = vrot.slane %v1269, %v1273
      %v1276 = vadd.f32 %v1205, %v1274
      %v1277 = vadd.f32 %v1206, %v1274
      %v1278 = vadd.f32 %v1207, %v1274
      %v1279 = vadd.f32 %v1208, %v1274
      %v1280 = vadd.f32 %v1209, %v1274
      %v1281 = vadd.f32 %v1210, %v1274
      %v1282 = vadd.f32 %v1211, %v1274
      %v1283 = vadd.f32 %v1212, %v1274
      %v1284 = vadd.f32 %v1213, %v1274
      %v1285 = vadd.f32 %v1214, %v1274
      %v1286 = vadd.f32 %v1215, %v1274
      %v1287 = vadd.f32 %v1216, %v1274
      %v1288 = vadd.f32 %v1217, %v1274
      %v1289 = vadd.f32 %v1218, %v1274
      %v1290 = vadd.f32 %v1219, %v1274
      %v1291 = vadd.f32 %v1220, %v1274
      %v1292 = vadd.f32 %v1221, %v1274
      %v1293 = vadd.f32 %v1222, %v1274
      %v1294 = vadd.f32 %v1223, %v1274
      %v1295 = vadd.f32 %v1224, %v1274
      %v1296 = vadd.f32 %v1225, %v1274
      %v1297 = vadd.f32 %v1226, %v1274
      %v1298 = vadd.f32 %v1227, %v1274
      %v1299 = vadd.f32 %v1228, %v1274
      %v1300 = vadd.f32 %v1229, %v1274
      %v1301 = vadd.f32 %v1230, %v1274
      %v1302 = vadd.f32 %v1231, %v1274
      %v1303 = vadd.f32 %v1232, %v1274
      %v1304 = vadd.f32 %v1233, %v1274
      %v1305 = vadd.f32 %v1234, %v1274
      %v1306 = vadd.f32 %v1235, %v1274
      %v1307 = vadd.f32 %v1236, %v1274
      %v1308 = vadd.f32 %v1237, %v1274
      %v1309 = vadd.f32 %v1238, %v1274
      %v1310 = vadd.f32 %v1239, %v1274
      %v1311 = vadd.f32 %v1240, %v1274
      %v1312 = vadd.f32 %v1241, %v1274
      %v1313 = vadd.f32 %v1242, %v1274
      %v1314 = vadd.f32 %v1243, %v1274
      %v1315 = vadd.f32 %v1244, %v1274
      %v1316 = vadd.f32 %v1245, %v1274
      %v1317 = vadd.f32 %v1246, %v1274
      %v1318 = vadd.f32 %v1247, %v1274
      %v1319 = vadd.f32 %v1248, %v1274
      %v1320 = vadd.f32 %v1249, %v1274
      %v1321 = vadd.f32 %v1250, %v1274
      %v1322 = vadd.f32 %v1251, %v1274
      %v1323 = vadd.f32 %v1252, %v1274
      %v1324 = vadd.f32 %v1253, %v1274
      %v1325 = vadd.f32 %v1254, %v1274
      %v1326 = vadd.f32 %v1255, %v1274
      %v1327 = vadd.f32 %v1256, %v1274
      %v1328 = vadd.f32 %v1257, %v1274
      %v1329 = vadd.f32 %v1258, %v1274
      %v1330 = vadd.f32 %v1259, %v1274
      %v1331 = vadd.f32 %v1260, %v1274
      %v1332 = vadd.f32 %v1261, %v1274
      %v1333 = vadd.f32 %v1262, %v1274
      %v1334 = vadd.f32 %v1263, %v1274
      %v1335 = vadd.f32 %v1264, %v1274
      %v1336 = vadd.f32 %v1265, %v1274
      %v1337 = vadd.f32 %v1266, %v1274
      %v1338 = vadd.f32 %v1267, %v1274
      %v1339 = vadd.f32 %v1268, %v1274
      %v1340 = vmax.f32 %v1276, 0.0
      %v1341 = vmax.f32 %v1277, 0.0
      %v1342 = vmax.f32 %v1278, 0.0
      %v1343 = vmax.f32 %v1279, 0.0
      %v1344 = vmax.f32 %v1280, 0.0
      %v1345 = vmax.f32 %v1281, 0.0
      %v1346 = vmax.f32 %v1282, 0.0
      %v1347 = vmax.f32 %v1283, 0.0
      %v1348 = vmax.f32 %v1284, 0.0
      %v1349 = vmax.f32 %v1285, 0.0
      %v1350 = vmax.f32 %v1286, 0.0
      %v1351 = vmax.f32 %v1287, 0.0
      %v1352 = vmax.f32 %v1288, 0.0
      %v1353 = vmax.f32 %v1289, 0.0
      %v1354 = vmax.f32 %v1290, 0.0
      %v1355 = vmax.f32 %v1291, 0.0
      %v1356 = vmax.f32 %v1292, 0.0
      %v1357 = vmax.f32 %v1293, 0.0
      %v1358 = vmax.f32 %v1294, 0.0
      %v1359 = vmax.f32 %v1295, 0.0
      %v1360 = vmax.f32 %v1296, 0.0
      %v1361 = vmax.f32 %v1297, 0.0
      %v1362 = vmax.f32 %v1298, 0.0
      %v1363 = vmax.f32 %v1299, 0.0
      %v1364 = vmax.f32 %v1300, 0.0
      %v1365 = vmax.f32 %v1301, 0.0
      %v1366 = vmax.f32 %v1302, 0.0
      %v1367 = vmax.f32 %v1303, 0.0
      %v1368 = vmax.f32 %v1304, 0.0
      %v1369 = vmax.f32 %v1305, 0.0
      %v1370 = vmax.f32 %v1306, 0.0
      %v1371 = vmax.f32 %v1307, 0.0
      %v1372 = vmax.f32 %v1308, 0.0
      %v1373 = vmax.f32 %v1309, 0.0
      %v1374 = vmax.f32 %v1310, 0.0
      %v1375 = vmax.f32 %v1311, 0.0
      %v1376 = vmax.f32 %v1312, 0.0
      %v1377 = vmax.f32 %v1313, 0.0
      %v1378 = vmax.f32 %v1314, 0.0
      %v1379 = vmax.f32 %v1315, 0.0
      %v1380 = vmax.f32 %v1316, 0.0
      %v1381 = vmax.f32 %v1317, 0.0
      %v1382 = vmax.f32 %v1318, 0.0
      %v1383 = vmax.f32 %v1319, 0.0
      %v1384 = vmax.f32 %v1320, 0.0
      %v1385 = vmax.f32 %v1321, 0.0
      %v1386 = vmax.f32 %v1322, 0.0
      %v1387 = vmax.f32 %v1323, 0.0
      %v1388 = vmax.f32 %v1324, 0.0
      %v1389 = vmax.f32 %v1325, 0.0
      %v1390 = vmax.f32 %v1326, 0.0
      %v1391 = vmax.f32 %v1327, 0.0
      %v1392 = vmax.f32 %v1328, 0.0
      %v1393 = vmax.f32 %v1329, 0.0
      %v1394 = vmax.f32 %v1330, 0.0
      %v1395 = vmax.f32 %v1331, 0.0
      %v1396 = vmax.f32 %v1332, 0.0
      %v1397 = vmax.f32 %v1333, 0.0
      %v1398 = vmax.f32 %v1334, 0.0
      %v1399 = vmax.f32 %v1335, 0.0
      %v1400 = vmax.f32 %v1336, 0.0
      %v1401 = vmax.f32 %v1337, 0.0
      %v1402 = vmax.f32 %v1338, 0.0
      %v1403 = vmax.f32 %v1339, 0.0
      %v1404 = vpack.c.bf16 %v1341, %v1340
      %v1405 = vpack.c.bf16 %v1343, %v1342
      %v1406 = vpack.c.bf16 %v1345, %v1344
      %v1407 = vpack.c.bf16 %v1347, %v1346
      %v1408 = vpack.c.bf16 %v1349, %v1348
      %v1409 = vpack.c.bf16 %v1351, %v1350
      %v1410 = vpack.c.bf16 %v1353, %v1352
      %v1411 = vpack.c.bf16 %v1355, %v1354
      %v1412 = vpack.c.bf16 %v1357, %v1356
      %v1413 = vpack.c.bf16 %v1359, %v1358
      %v1414 = vpack.c.bf16 %v1361, %v1360
      %v1415 = vpack.c.bf16 %v1363, %v1362
      %v1416 = vpack.c.bf16 %v1365, %v1364
      %v1417 = vpack.c.bf16 %v1367, %v1366
      %v1418 = vpack.c.bf16 %v1369, %v1368
      %v1419 = vpack.c.bf16 %v1371, %v1370
      %v1420 = vpack.c.bf16 %v1373, %v1372
      %v1421 = vpack.c.bf16 %v1375, %v1374
      %v1422 = vpack.c.bf16 %v1377, %v1376
      %v1423 = vpack.c.bf16 %v1379, %v1378
      %v1424 = vpack.c.bf16 %v1381, %v1380
      %v1425 = vpack.c.bf16 %v1383, %v1382
      %v1426 = vpack.c.bf16 %v1385, %v1384
      %v1427 = vpack.c.bf16 %v1387, %v1386
      %v1428 = vpack.c.bf16 %v1389, %v1388
      %v1429 = vpack.c.bf16 %v1391, %v1390
      %v1430 = vpack.c.bf16 %v1393, %v1392
      %v1431 = vpack.c.bf16 %v1395, %v1394
      %v1432 = vpack.c.bf16 %v1397, %v1396
      %v1433 = vpack.c.bf16 %v1399, %v1398
      %v1434 = vpack.c.bf16 %v1401, %v1400
      %v1435 = vpack.c.bf16 %v1403, %v1402
      %v1468 = vunpack.c.l.b16 %v1404
      %v1469 = vunpack.c.h.b16 %v1404
      %v1470 = vunpack.c.l.b16 %v1405
      %v1471 = vunpack.c.h.b16 %v1405
      %v1472 = vunpack.c.l.b16 %v1406
      %v1473 = vunpack.c.h.b16 %v1406
      %v1474 = vunpack.c.l.b16 %v1407
      %v1475 = vunpack.c.h.b16 %v1407
      %v1476 = vunpack.c.l.b16 %v1408
      %v1477 = vunpack.c.h.b16 %v1408
      %v1478 = vunpack.c.l.b16 %v1409
      %v1479 = vunpack.c.h.b16 %v1409
      %v1480 = vunpack.c.l.b16 %v1410
      %v1481 = vunpack.c.h.b16 %v1410
      %v1482 = vunpack.c.l.b16 %v1411
      %v1483 = vunpack.c.h.b16 %v1411
      %v1484 = vunpack.c.l.b16 %v1412
      %v1485 = vunpack.c.h.b16 %v1412
      %v1486 = vunpack.c.l.b16 %v1413
      %v1487 = vunpack.c.h.b16 %v1413
      %v1488 = vunpack.c.l.b16 %v1414
      %v1489 = vunpack.c.h.b16 %v1414
      %v1490 = vunpack.c.l.b16 %v1415
      %v1491 = vunpack.c.h.b16 %v1415
      %v1492 = vunpack.c.l.b16 %v1416
      %v1493 = vunpack.c.h.b16 %v1416
      %v1494 = vunpack.c.l.b16 %v1417
      %v1495 = vunpack.c.h.b16 %v1417
      %v1496 = vunpack.c.l.b16 %v1418
      %v1497 = vunpack.c.h.b16 %v1418
      %v1498 = vunpack.c.l.b16 %v1419
      %v1499 = vunpack.c.h.b16 %v1419
      %v1500 = vunpack.c.l.b16 %v1420
      %v1501 = vunpack.c.h.b16 %v1420
      %v1502 = vunpack.c.l.b16 %v1421
      %v1503 = vunpack.c.h.b16 %v1421
      %v1504 = vunpack.c.l.b16 %v1422
      %v1505 = vunpack.c.h.b16 %v1422
      %v1506 = vunpack.c.l.b16 %v1423
      %v1507 = vunpack.c.h.b16 %v1423
      %v1508 = vunpack.c.l.b16 %v1424
      %v1509 = vunpack.c.h.b16 %v1424
      %v1510 = vunpack.c.l.b16 %v1425
      %v1511 = vunpack.c.h.b16 %v1425
      %v1512 = vunpack.c.l.b16 %v1426
      %v1513 = vunpack.c.h.b16 %v1426
      %v1514 = vunpack.c.l.b16 %v1427
      %v1515 = vunpack.c.h.b16 %v1427
      %v1516 = vunpack.c.l.b16 %v1428
      %v1517 = vunpack.c.h.b16 %v1428
      %v1518 = vunpack.c.l.b16 %v1429
      %v1519 = vunpack.c.h.b16 %v1429
      %v1520 = vunpack.c.l.b16 %v1430
      %v1521 = vunpack.c.h.b16 %v1430
      %v1522 = vunpack.c.l.b16 %v1431
      %v1523 = vunpack.c.h.b16 %v1431
      %v1524 = vunpack.c.l.b16 %v1432
      %v1525 = vunpack.c.h.b16 %v1432
      %v1526 = vunpack.c.l.b16 %v1433
      %v1527 = vunpack.c.h.b16 %v1433
      %v1528 = vunpack.c.l.b16 %v1434
      %v1529 = vunpack.c.h.b16 %v1434
      %v1530 = vunpack.c.l.b16 %v1435
      %v1531 = vunpack.c.h.b16 %v1435
      %v1532 = vpack.c.b16 %v1468, %v1468
      %v1533 = vpack.c.b16 %v1469, %v1469
      %v1534 = vpack.c.b16 %v1470, %v1470
      %v1535 = vpack.c.b16 %v1471, %v1471
      %v1536 = vpack.c.b16 %v1472, %v1472
      %v1537 = vpack.c.b16 %v1473, %v1473
      %v1538 = vpack.c.b16 %v1474, %v1474
      %v1539 = vpack.c.b16 %v1475, %v1475
      %v1540 = vpack.c.b16 %v1476, %v1476
      %v1541 = vpack.c.b16 %v1477, %v1477
      %v1542 = vpack.c.b16 %v1478, %v1478
      %v1543 = vpack.c.b16 %v1479, %v1479
      %v1544 = vpack.c.b16 %v1480, %v1480
      %v1545 = vpack.c.b16 %v1481, %v1481
      %v1546 = vpack.c.b16 %v1482, %v1482
      %v1547 = vpack.c.b16 %v1483, %v1483
      %v1548 = vpack.c.b16 %v1484, %v1484
      %v1549 = vpack.c.b16 %v1485, %v1485
      %v1550 = vpack.c.b16 %v1486, %v1486
      %v1551 = vpack.c.b16 %v1487, %v1487
      %v1552 = vpack.c.b16 %v1488, %v1488
      %v1553 = vpack.c.b16 %v1489, %v1489
      %v1554 = vpack.c.b16 %v1490, %v1490
      %v1555 = vpack.c.b16 %v1491, %v1491
      %v1556 = vpack.c.b16 %v1492, %v1492
      %v1557 = vpack.c.b16 %v1493, %v1493
      %v1558 = vpack.c.b16 %v1494, %v1494
      %v1559 = vpack.c.b16 %v1495, %v1495
      %v1560 = vpack.c.b16 %v1496, %v1496
      %v1561 = vpack.c.b16 %v1497, %v1497
      %v1562 = vpack.c.b16 %v1498, %v1498
      %v1563 = vpack.c.b16 %v1499, %v1499
      %v1564 = vpack.c.b16 %v1500, %v1500
      %v1565 = vpack.c.b16 %v1501, %v1501
      %v1566 = vpack.c.b16 %v1502, %v1502
      %v1567 = vpack.c.b16 %v1503, %v1503
      %v1568 = vpack.c.b16 %v1504, %v1504
      %v1569 = vpack.c.b16 %v1505, %v1505
      %v1570 = vpack.c.b16 %v1506, %v1506
      %v1571 = vpack.c.b16 %v1507, %v1507
      %v1572 = vpack.c.b16 %v1508, %v1508
      %v1573 = vpack.c.b16 %v1509, %v1509
      %v1574 = vpack.c.b16 %v1510, %v1510
      %v1575 = vpack.c.b16 %v1511, %v1511
      %v1576 = vpack.c.b16 %v1512, %v1512
      %v1577 = vpack.c.b16 %v1513, %v1513
      %v1578 = vpack.c.b16 %v1514, %v1514
      %v1579 = vpack.c.b16 %v1515, %v1515
      %v1580 = vpack.c.b16 %v1516, %v1516
      %v1581 = vpack.c.b16 %v1517, %v1517
      %v1582 = vpack.c.b16 %v1518, %v1518
      %v1583 = vpack.c.b16 %v1519, %v1519
      %v1584 = vpack.c.b16 %v1520, %v1520
      %v1585 = vpack.c.b16 %v1521, %v1521
      %v1586 = vpack.c.b16 %v1522, %v1522
      %v1587 = vpack.c.b16 %v1523, %v1523
      %v1588 = vpack.c.b16 %v1524, %v1524
      %v1589 = vpack.c.b16 %v1525, %v1525
      %v1590 = vpack.c.b16 %v1526, %v1526
      %v1591 = vpack.c.b16 %v1527, %v1527
      %v1592 = vpack.c.b16 %v1528, %v1528
      %v1593 = vpack.c.b16 %v1529, %v1529
      %v1594 = vpack.c.b16 %v1530, %v1530
      %v1595 = vpack.c.b16 %v1531, %v1531
      %1660 = vst [vmem:[#allocation11] sm:$0xf] %v1532
      %1661 = vst [vmem:[#allocation11 + $0x4] sm:$0xf] %v1533
      %1662 = vst [vmem:[#allocation11 + $0x8] sm:$0xf] %v1534
      %1663 = vst [vmem:[#allocation11 + $0xc] sm:$0xf] %v1535
      %1664 = vst [vmem:[#allocation11 + $0x10] sm:$0xf] %v1536
      %1665 = vst [vmem:[#allocation11 + $0x14] sm:$0xf] %v1537
      %1666 = vst [vmem:[#allocation11 + $0x18] sm:$0xf] %v1538
      %1667 = vst [vmem:[#allocation11 + $0x1c] sm:$0xf] %v1539
      %1668 = vst [vmem:[#allocation11 + $0x20] sm:$0xf] %v1540
      %1669 = vst [vmem:[#allocation11 + $0x24] sm:$0xf] %v1541
      %1670 = vst [vmem:[#allocation11 + $0x28] sm:$0xf] %v1542
      %1671 = vst [vmem:[#allocation11 + $0x2c] sm:$0xf] %v1543
      %1672 = vst [vmem:[#allocation11 + $0x30] sm:$0xf] %v1544
      %1673 = vst [vmem:[#allocation11 + $0x34] sm:$0xf] %v1545
      %1674 = vst [vmem:[#allocation11 + $0x38] sm:$0xf] %v1546
      %1675 = vst [vmem:[#allocation11 + $0x3c] sm:$0xf] %v1547
      %1676 = vst [vmem:[#allocation11 + $0x40] sm:$0xf] %v1548
      %1677 = vst [vmem:[#allocation11 + $0x44] sm:$0xf] %v1549
      %1678 = vst [vmem:[#allocation11 + $0x48] sm:$0xf] %v1550
      %1679 = vst [vmem:[#allocation11 + $0x4c] sm:$0xf] %v1551
      %1680 = vst [vmem:[#allocation11 + $0x50] sm:$0xf] %v1552
      %1681 = vst [vmem:[#allocation11 + $0x54] sm:$0xf] %v1553
      %1682 = vst [vmem:[#allocation11 + $0x58] sm:$0xf] %v1554
      %1683 = vst [vmem:[#allocation11 + $0x5c] sm:$0xf] %v1555
      %1684 = vst [vmem:[#allocation11 + $0x60] sm:$0xf] %v1556
      %1685 = vst [vmem:[#allocation11 + $0x64] sm:$0xf] %v1557
      %1686 = vst [vmem:[#allocation11 + $0x68] sm:$0xf] %v1558
      %1687 = vst [vmem:[#allocation11 + $0x6c] sm:$0xf] %v1559
      %1688 = vst [vmem:[#allocation11 + $0x70] sm:$0xf] %v1560
      %1689 = vst [vmem:[#allocation11 + $0x74] sm:$0xf] %v1561
      %1690 = vst [vmem:[#allocation11 + $0x78] sm:$0xf] %v1562
      %1691 = vst [vmem:[#allocation11 + $0x7c] sm:$0xf] %v1563
      %1692 = vst [vmem:[#allocation11 + $0x80] sm:$0xf] %v1564
      %1693 = vst [vmem:[#allocation11 + $0x84] sm:$0xf] %v1565
      %1694 = vst [vmem:[#allocation11 + $0x88] sm:$0xf] %v1566
      %1695 = vst [vmem:[#allocation11 + $0x8c] sm:$0xf] %v1567
      %1696 = vst [vmem:[#allocation11 + $0x90] sm:$0xf] %v1568
      %1697 = vst [vmem:[#allocation11 + $0x94] sm:$0xf] %v1569
      %1698 = vst [vmem:[#allocation11 + $0x98] sm:$0xf] %v1570
      %1699 = vst [vmem:[#allocation11 + $0x9c] sm:$0xf] %v1571
      %1700 = vst [vmem:[#allocation11 + $0xa0] sm:$0xf] %v1572
      %1701 = vst [vmem:[#allocation11 + $0xa4] sm:$0xf] %v1573
      %1702 = vst [vmem:[#allocation11 + $0xa8] sm:$0xf] %v1574
      %1703 = vst [vmem:[#allocation11 + $0xac] sm:$0xf] %v1575
      %1704 = vst [vmem:[#allocation11 + $0xb0] sm:$0xf] %v1576
      %1705 = vst [vmem:[#allocation11 + $0xb4] sm:$0xf] %v1577
      %1706 = vst [vmem:[#allocation11 + $0xb8] sm:$0xf] %v1578
      %1707 = vst [vmem:[#allocation11 + $0xbc] sm:$0xf] %v1579
      %1708 = vst [vmem:[#allocation11 + $0xc0] sm:$0xf] %v1580
      %1709 = vst [vmem:[#allocation11 + $0xc4] sm:$0xf] %v1581
      %1710 = vst [vmem:[#allocation11 + $0xc8] sm:$0xf] %v1582
      %1711 = vst [vmem:[#allocation11 + $0xcc] sm:$0xf] %v1583
      %1712 = vst [vmem:[#allocation11 + $0xd0] sm:$0xf] %v1584
      %1713 = vst [vmem:[#allocation11 + $0xd4] sm:$0xf] %v1585
      %1714 = vst [vmem:[#allocation11 + $0xd8] sm:$0xf] %v1586
      %1715 = vst [vmem:[#allocation11 + $0xdc] sm:$0xf] %v1587
      %1716 = vst [vmem:[#allocation11 + $0xe0] sm:$0xf] %v1588
      %1717 = vst [vmem:[#allocation11 + $0xe4] sm:$0xf] %v1589
      %1718 = vst [vmem:[#allocation11 + $0xe8] sm:$0xf] %v1590
      %1719 = vst [vmem:[#allocation11 + $0xec] sm:$0xf] %v1591
      %1720 = vst [vmem:[#allocation11 + $0xf0] sm:$0xf] %v1592
      %1721 = vst [vmem:[#allocation11 + $0xf4] sm:$0xf] %v1593
      %1722 = vst [vmem:[#allocation11 + $0xf8] sm:$0xf] %v1594
      %1723 = vst [vmem:[#allocation11 + $0xfc] sm:$0xf] %v1595
    $region41: #{tpu_custom_call.1} parent=1 // pred_fallthru
      _
    // Predicated region
    $region42: #{tpu_custom_call.1} parent=1 // pred_check
      _
    $region43: #{tpu_custom_call.1} parent=1 // pred_check_branch
      %1725 = sbr.rel (0) target = $region45
    $region44: #{tpu_custom_call.1} parent=1 // pred_region
      %s1727 = ssub.s32 4096, 4096
      %1728 = vsyncadd [#allocation5], %s1727
      %s1729 = sshll.u32 [#allocation11], 4
      %s1730 = int_to_ptr.vmem [resolvable:$true] %s1729
      %1735 = dma.vmem_to_hbm [thread:$0]  %s1730, 4096, %s4, [#allocation5], 64, 64, 4
    $region45: #{tpu_custom_call.1} parent=1 // pred_fallthru
      _
    // Predicated region
    $region46: #{tpu_custom_call.1} parent=1 // pred_check
      _
    $region47: #{tpu_custom_call.1} parent=1 // pred_check_branch
      %1737 = sbr.rel (0) target = $region49
    $region48: #{tpu_custom_call.1} parent=1 // pred_region
      %1738 = dma.done [#allocation5], 4096
    $region49: #{tpu_custom_call.1} parent=1 // pred_fallthru
      _
    %1739 = vsyncpa [#allocation4], 1
    %1740 = vsyncpa [#allocation7], 1
    %1741 = vsyncpa [#allocation10], 1
    %1742 = vsyncpa [#allocation5], 1

</llo_original>
